<compile_context>
chip_gen: v5e
topology: v5e:2x2
jax: 0.10.0
libtpu: 0.0.40
codegen_flags: <defaults>
</compile_context>

<pallas_src>
import functools
import math

import jax
import jax.numpy as jnp
from jax import lax
from jax.experimental import pallas as pl
from jax.experimental.pallas import tpu as pltpu

LN_EPS = 1e-5                    # torch.nn.LayerNorm default
GEMM_DTYPE = jnp.bfloat16        # MXU operand dtype (f32 accumulation)
TM_MAX = 256                     # row-tile cap
TN_MAX = 2048                    # col-tile cap for plain linears
SEQ_ALIGN = 16                   # sublane alignment (bf16 packing -> 16)


# ------------------------------ tiling helpers ------------------------------

def _round_up(x, m):
    return (x + m - 1) // m * m


def _pick_row_tile(m):
    """Largest tile <= TM_MAX that exactly divides m (zero wasted rows).

    Falls back to a single full-extent block when m is not sublane aligned
    (full-extent blocks are always legal)."""
    align = 16 if m % 16 == 0 else (8 if m % 8 == 0 else 0)
    if align == 0:
        return m
    t = min(TM_MAX, m)
    t -= t % align
    while m % t:
        t -= align
    return t


def _pick_col_tile(n):
    """Tile the output-feature axis only when it is large and 128-aligned."""
    if n <= TN_MAX or n % 128 != 0:
        return n
    t = TN_MAX - TN_MAX % 128
    while n % t:
        t -= 128
    return t


def _layernorm_f32(y, g, b, eps):
    mean = jnp.mean(y, axis=-1, keepdims=True)
    var = jnp.mean(jnp.square(y - mean), axis=-1, keepdims=True)
    return (y - mean) * lax.rsqrt(var + eps) * g + b


# ------------------------------ Pallas kernels ------------------------------

def _linear_kernel(x_ref, w_ref, b_ref, o_ref, *, relu):
    """o = [relu](x @ w + b); bf16 MXU operands, f32 accumulate + epilogue."""
    x = x_ref[...].astype(w_ref.dtype)
    acc = jnp.dot(x, w_ref[...], preferred_element_type=jnp.float32)
    y = acc + b_ref[...]
    if relu:
        y = jnp.maximum(y, 0.0)
    o_ref[...] = y.astype(o_ref.dtype)


def _attn_block_kernel(qkv_ref, r_ref, wo_ref, bo_ref, g_ref, be_ref, o_ref, *,
                       num_heads, head_dim, seq_len, scale, eps):
    """One batch: all-heads attention + out_proj + residual + LayerNorm.

    qkv_ref: (Sp, 3H) bf16 rows of this batch; r_ref: (Sp, H) f32 residual.
    Scores / softmax / ctx never leave VMEM."""
    sp = qkv_ref.shape[0]
    h = num_heads * head_dim
    qkv = qkv_ref[...]
    k_f32 = qkv[:, h:2 * h].astype(jnp.float32)          # (Sp, H)

    ctx_parts = []
    for hd in range(num_heads):                          # static unroll
        lo, hi = hd * head_dim, (hd + 1) * head_dim
        q = qkv[:, lo:hi].astype(jnp.float32)            # (Sp, dh)
        k = k_f32[:, lo:hi]                              # (Sp, dh)
        # q @ k^T via contracting dims (1,1): Mosaic uses the MXU
        # transposed-RHS path, no materialized XLU transpose.
        s = lax.dot_general(q, k, (((1,), (1,)), ((), ())),
                            preferred_element_type=jnp.float32) * scale
        if sp > seq_len:                                 # mask padded keys
            col = lax.broadcasted_iota(jnp.int32, (sp, sp), 1)
            s = jnp.where(col < seq_len, s, -1e30)
        m = jnp.max(s, axis=-1, keepdims=True)
        p = jnp.exp(s - m)
        l = jnp.sum(p, axis=-1, keepdims=True)
        c = jnp.dot(p.astype(qkv.dtype), qkv[:, 2 * h + lo:2 * h + hi],
                    preferred_element_type=jnp.float32)
        ctx_parts.append(c * pl.reciprocal(l, approx=True))

    ctx = jnp.concatenate(ctx_parts, axis=-1)            # (Sp, H) f32
    y = jnp.dot(ctx.astype(wo_ref.dtype), wo_ref[...],
                preferred_element_type=jnp.float32)
    y = y + bo_ref[...] + r_ref[...]
    o_ref[...] = _layernorm_f32(y, g_ref[...], be_ref[...], eps).astype(
        o_ref.dtype)


def _ffn_kernel(x_ref, w1_ref, b1_ref, w2_ref, b2_ref, g_ref, be_ref, o_ref, *,
                eps):
    """o = LayerNorm(x + relu(x@w1+b1)@w2 + b2); (tm, 4H) hidden stays in VMEM."""
    x = x_ref[...]                                       # (tm, H) f32
    hmid = jnp.dot(x.astype(w1_ref.dtype), w1_ref[...],
                   preferred_element_type=jnp.float32) + b1_ref[...]
    hmid = jnp.maximum(hmid, 0.0)
    y = jnp.dot(hmid.astype(w2_ref.dtype), w2_ref[...],
                preferred_element_type=jnp.float32) + b2_ref[...] + x
    o_ref[...] = _layernorm_f32(y, g_ref[...], be_ref[...], eps).astype(
        o_ref.dtype)


# ------------------------------ JAX wrappers -------------------------------

def linear_pallas(x, w, b, *, relu=False, out_dtype=jnp.float32):
    m, k = x.shape
    _, n = w.shape
    tm = _pick_row_tile(m)
    tn = _pick_col_tile(n)
    cost = pl.CostEstimate(
        flops=2 * m * k * n, transcendentals=0,
        bytes_accessed=m * k * x.dtype.itemsize + k * n * 2
        + m * n * jnp.dtype(out_dtype).itemsize)
    return pl.pallas_call(
        functools.partial(_linear_kernel, relu=relu),
        out_shape=jax.ShapeDtypeStruct((m, n), out_dtype),
        grid_spec=pltpu.PrefetchScalarGridSpec(
            num_scalar_prefetch=0,
            grid=(m // tm, n // tn),
            in_specs=[pl.BlockSpec((tm, k), lambda i, j: (i, 0)),
                      pl.BlockSpec((k, tn), lambda i, j: (0, j)),
                      pl.BlockSpec((1, tn), lambda i, j: (0, j))],
            out_specs=pl.BlockSpec((tm, tn), lambda i, j: (i, j)),
        ),
        compiler_params=pltpu.CompilerParams(
            dimension_semantics=("parallel", "parallel")),
        cost_estimate=cost,
    )(x, w.astype(GEMM_DTYPE), b.reshape(1, n).astype(jnp.float32))


def attention_block_pallas(qkv, resid, w_o, b_o, gamma, beta, *, batch,
                           seq_pad, seq_len, num_heads):
    m, three_h = qkv.shape
    h = three_h // 3
    dh = h // num_heads
    scale = 1.0 / math.sqrt(dh)
    cost = pl.CostEstimate(
        flops=batch * (4 * seq_pad * seq_pad * h + 2 * seq_pad * h * h),
        transcendentals=batch * num_heads * seq_pad * seq_pad,
        bytes_accessed=qkv.size * 2 + resid.size * 4 + h * h * 2 + m * h * 4)
    return pl.pallas_call(
        functools.partial(_attn_block_kernel, num_heads=num_heads,
                          head_dim=dh, seq_len=seq_len, scale=scale,
                          eps=LN_EPS),
        out_shape=jax.ShapeDtypeStruct((m, h), jnp.float32),
        grid_spec=pltpu.PrefetchScalarGridSpec(
            num_scalar_prefetch=0,
            grid=(batch,),
            in_specs=[pl.BlockSpec((seq_pad, three_h), lambda b: (b, 0)),
                      pl.BlockSpec((seq_pad, h), lambda b: (b, 0)),
                      pl.BlockSpec((h, h), lambda b: (0, 0)),
                      pl.BlockSpec((1, h), lambda b: (0, 0)),
                      pl.BlockSpec((1, h), lambda b: (0, 0)),
                      pl.BlockSpec((1, h), lambda b: (0, 0))],
            out_specs=pl.BlockSpec((seq_pad, h), lambda b: (b, 0)),
        ),
        compiler_params=pltpu.CompilerParams(
            dimension_semantics=("parallel",)),
        cost_estimate=cost,
    )(qkv, resid, w_o.astype(GEMM_DTYPE),
      b_o.reshape(1, h).astype(jnp.float32),
      gamma.reshape(1, h).astype(jnp.float32),
      beta.reshape(1, h).astype(jnp.float32))


def ffn_block_pallas(x, w1, b1, w2, b2, gamma, beta):
    m, h = x.shape
    f = w1.shape[1]
    tm = _pick_row_tile(m)
    cost = pl.CostEstimate(
        flops=4 * m * h * f, transcendentals=0,
        bytes_accessed=m * h * 8 + 2 * h * f * 2)
    return pl.pallas_call(
        functools.partial(_ffn_kernel, eps=LN_EPS),
        out_shape=jax.ShapeDtypeStruct((m, h), jnp.float32),
        grid_spec=pltpu.PrefetchScalarGridSpec(
            num_scalar_prefetch=0,
            grid=(m // tm,),
            in_specs=[pl.BlockSpec((tm, h), lambda i: (i, 0)),
                      pl.BlockSpec((h, f), lambda i: (0, 0)),
                      pl.BlockSpec((1, f), lambda i: (0, 0)),
                      pl.BlockSpec((f, h), lambda i: (0, 0)),
                      pl.BlockSpec((1, h), lambda i: (0, 0)),
                      pl.BlockSpec((1, h), lambda i: (0, 0)),
                      pl.BlockSpec((1, h), lambda i: (0, 0))],
            out_specs=pl.BlockSpec((tm, h), lambda i: (i, 0)),
        ),
        compiler_params=pltpu.CompilerParams(
            dimension_semantics=("parallel",)),
        cost_estimate=cost,
    )(x, w1.astype(GEMM_DTYPE), b1.reshape(1, f).astype(jnp.float32),
      w2.astype(GEMM_DTYPE), b2.reshape(1, h).astype(jnp.float32),
      gamma.reshape(1, h).astype(jnp.float32),
      beta.reshape(1, h).astype(jnp.float32))


# ------------------------------ model forward ------------------------------

def transformer_forward(src, params, num_heads):
    """src: (B, input_dim, S) -> logits (B, num_classes)."""
    b, d_in, s = src.shape
    h = params["w_emb"].shape[1]
    sp = _round_up(s, SEQ_ALIGN)

    # Single layout shuffle for the whole forward: (B, D_in, S) ->
    # batch-major rows (B*Sp, D_in); S is zero-padded once (padded keys are
    # masked in attention, padded rows dropped at the end).
    x = jnp.transpose(src, (0, 2, 1))                        # (B, S, D_in)
    if sp != s:
        x = jnp.pad(x, ((0, 0), (0, sp - s), (0, 0)))
    x = x.reshape(b * sp, d_in)

    x = linear_pallas(x, params["w_emb"], params["b_emb"])   # (M, H) f32

    for lp in params["layers"]:
        # fused QKV projection -> bf16 intermediate
        qkv = linear_pallas(x, lp["w_qkv"], lp["b_qkv"],
                            out_dtype=GEMM_DTYPE)            # (M, 3H) bf16
        # all-heads attention + out_proj + residual + LayerNorm (one kernel)
        x = attention_block_pallas(qkv, x, lp["w_o"], lp["b_o"],
                                   lp["g1"], lp["be1"],
                                   batch=b, seq_pad=sp, seq_len=s,
                                   num_heads=num_heads)      # (M, H) f32
        # fused FFN: linear1+ReLU+linear2+residual+LayerNorm (one kernel)
        x = ffn_block_pallas(x, lp["w1"], lp["b1"], lp["w2"], lp["b2"],
                             lp["g2"], lp["be2"])            # (M, H) f32

    last = x.reshape(b, sp, h)[:, s - 1, :]                  # (B, H)
    return linear_pallas(last, params["w_out"], params["b_out"])


# ------------------------------ params / init ------------------------------

def init_transformer_params(key, input_dim, num_heads, hidden_dim, num_layers,
                            num_classes):
    del num_heads  # head count is a forward-time arg
    ks = jax.random.split(key, 2 + num_layers)

    def dense(k, din, dout):
        kw, kb = jax.random.split(k)
        w = jax.random.normal(kw, (din, dout), jnp.float32) / jnp.sqrt(din)
        bb = 0.1 * jax.random.normal(kb, (dout,), jnp.float32)
        return w, bb

    w_emb, b_emb = dense(ks[0], input_dim, hidden_dim)
    w_out, b_out = dense(ks[1], hidden_dim, num_classes)
    layers = []
    for l in range(num_layers):
        lk = jax.random.split(ks[2 + l], 8)
        w_qkv, b_qkv = dense(lk[0], hidden_dim, 3 * hidden_dim)
        w_o, b_o = dense(lk[1], hidden_dim, hidden_dim)
        w1, b1 = dense(lk[2], hidden_dim, 4 * hidden_dim)
        w2, b2 = dense(lk[3], 4 * hidden_dim, hidden_dim)
        g1 = 1.0 + 0.05 * jax.random.normal(lk[4], (hidden_dim,), jnp.float32)
        be1 = 0.05 * jax.random.normal(lk[5], (hidden_dim,), jnp.float32)
        g2 = 1.0 + 0.05 * jax.random.normal(lk[6], (hidden_dim,), jnp.float32)
        be2 = 0.05 * jax.random.normal(lk[7], (hidden_dim,), jnp.float32)
        layers.append(dict(w_qkv=w_qkv, b_qkv=b_qkv, w_o=w_o, b_o=b_o,
                           w1=w1, b1=b1, w2=w2, b2=b2,
                           g1=g1, be1=be1, g2=g2, be2=be2))
    return dict(w_emb=w_emb, b_emb=b_emb, w_out=w_out, b_out=b_out,
                layers=layers)


# --------------------------- pure-JAX reference ----------------------------

def _ln_ref(x, g, b, eps=LN_EPS):
    mean = jnp.mean(x, axis=-1, keepdims=True)
    var = jnp.mean((x - mean) ** 2, axis=-1, keepdims=True)
    return (x - mean) * lax.rsqrt(var + eps) * g + b


def transformer_reference(src, params, num_heads):
    b, _, s = src.shape
    h = params["w_emb"].shape[1]
    dh = h // num_heads
    x = jnp.transpose(src, (2, 0, 1))                        # (S, B, D_in)
    x = x @ params["w_emb"] + params["b_emb"]                # (S, B, H)

    for lp in params["layers"]:
        qkv = x @ lp["w_qkv"] + lp["b_qkv"]                  # (S, B, 3H)
        q, k, v = jnp.split(qkv, 3, axis=-1)

        def heads(t):
            return jnp.transpose(t.reshape(s, b, num_heads, dh), (1, 2, 0, 3))

        qh, kh, vh = heads(q), heads(k), heads(v)
        scores = jnp.einsum("bhsd,bhtd->bhst", qh, kh) / math.sqrt(dh)
        attn = jax.nn.softmax(scores, axis=-1)
        ctx = jnp.einsum("bhst,bhtd->bhsd", attn, vh)        # (B, nh, S, Dh)
        ctx = jnp.transpose(ctx, (2, 0, 1, 3)).reshape(s, b, h)
        x = _ln_ref(x + (ctx @ lp["w_o"] + lp["b_o"]), lp["g1"], lp["be1"])
        ff = jnp.maximum(x @ lp["w1"] + lp["b1"], 0.0) @ lp["w2"] + lp["b2"]
        x = _ln_ref(x + ff, lp["g2"], lp["be2"])

    return x[-1] @ params["w_out"] + params["b_out"]         # (B, C)


# ---------------------------------- main -----------------------------------

if __name__ == "__main__":
    key = jax.random.PRNGKey(0)
    kx, kp = jax.random.split(key)

    B, D_IN, S = 2, 4, 8          # src: (batch, input_dim, seq)
    HIDDEN, N_HEADS, N_LAYERS, N_CLASSES = 32, 4, 2, 8

    src = jax.random.normal(kx, (B, D_IN, S), jnp.float32)
    params = init_transformer_params(kp, D_IN, N_HEADS, HIDDEN, N_LAYERS,
                                     N_CLASSES)

    fwd = jax.jit(functools.partial(transformer_forward, num_heads=N_HEADS))
    out = jax.block_until_ready(fwd(src, params))

    assert out.shape == (B, N_CLASSES), out.shape
    ref = transformer_reference(src, params, N_HEADS)
    # bf16 MXU operands (f32 accumulation) vs f32 reference -> loosened bound.
    max_err = float(jnp.max(jnp.abs(out - ref)))
    assert max_err < 2e-1, f"max abs err {max_err}"

    print("KERNEL_OK")
</pallas_src>

<mosaic_0001>
module attributes {stable_mosaic.version = 11 : i64} {
  func.func @_attn_block_kernel(%arg0: i32, %arg1: memref<16x96xbf16, #tpu.memory_space<vmem>>, %arg2: memref<16x32xf32, #tpu.memory_space<vmem>>, %arg3: memref<32x32xbf16, #tpu.memory_space<vmem>>, %arg4: memref<1x32xf32, #tpu.memory_space<vmem>>, %arg5: memref<1x32xf32, #tpu.memory_space<vmem>>, %arg6: memref<1x32xf32, #tpu.memory_space<vmem>>, %arg7: memref<16x32xf32, #tpu.memory_space<vmem>>) attributes {dimension_semantics = [#tpu.dimension_semantics<parallel>], iteration_bounds = array<i64: 2>, scalar_prefetch = 0 : i64, scratch_operands = 0 : i64, tpu.core_type = #tpu.core_type<tc>, window_params = [{transform_indices = @transform_0, window_bounds = array<i64: 16, 96>}, {transform_indices = @transform_1, window_bounds = array<i64: 16, 32>}, {pipeline_mode = #tpu.pipeline_mode<synchronous>, transform_indices = @transform_2, window_bounds = array<i64: 32, 32>}, {pipeline_mode = #tpu.pipeline_mode<synchronous>, transform_indices = @transform_3, window_bounds = array<i64: 1, 32>}, {pipeline_mode = #tpu.pipeline_mode<synchronous>, transform_indices = @transform_4, window_bounds = array<i64: 1, 32>}, {pipeline_mode = #tpu.pipeline_mode<synchronous>, transform_indices = @transform_5, window_bounds = array<i64: 1, 32>}, {transform_indices = @transform_6, window_bounds = array<i64: 16, 32>}]} {
    %c0 = arith.constant 0 : index
    %c0_0 = arith.constant 0 : index
    %0 = vector.load %arg1[%c0, %c0_0] : memref<16x96xbf16, #tpu.memory_space<vmem>>, vector<16x96xbf16>
    %1 = vector.extract_strided_slice %0 {offsets = [0, 32], sizes = [16, 32], strides = [1, 1]} : vector<16x96xbf16> to vector<16x32xbf16>
    %2 = arith.extf %1 : vector<16x32xbf16> to vector<16x32xf32>
    %3 = vector.extract_strided_slice %0 {offsets = [0, 0], sizes = [16, 8], strides = [1, 1]} : vector<16x96xbf16> to vector<16x8xbf16>
    %4 = arith.extf %3 : vector<16x8xbf16> to vector<16x8xf32>
    %5 = vector.extract_strided_slice %2 {offsets = [0, 0], sizes = [16, 8], strides = [1, 1]} : vector<16x32xf32> to vector<16x8xf32>
    %cst = arith.constant dense<0.000000e+00> : vector<16x16xf32>
    %6 = tpu.matmul %4, %5, %cst {dimension_numbers = #tpu.dot_dimension_numbers<[1], [1], [0], [0], [0, 0, 1, 0], [], []>} : vector<16x8xf32>, vector<16x8xf32>, vector<16x16xf32> -> vector<16x16xf32>
    %cst_1 = arith.constant 0.353553385 : f32
    %7 = vector.broadcast %cst_1 : f32 to vector<16x16xf32>
    %8 = arith.mulf %6, %7 : vector<16x16xf32>
    %9 = tpu.iota {dimensions = array<i32: 1>} : vector<16x16xi32>
    %c8_i32 = arith.constant 8 : i32
    %10 = vector.broadcast %c8_i32 : i32 to vector<16x16xi32>
    %11 = arith.cmpi slt, %9, %10 : vector<16x16xi32>
    %cst_2 = arith.constant -1.000000e+30 : f32
    %12 = vector.broadcast %cst_2 : f32 to vector<16x16xf32>
    %13 = arith.select %11, %8, %12 : vector<16x16xi1>, vector<16x16xf32>
    %cst_3 = arith.constant dense<0xFF800000> : vector<16xf32>
    %14 = vector.multi_reduction <maximumf>, %13, %cst_3 [1] : vector<16x16xf32> to vector<16xf32>
    %15 = vector.shape_cast %14 : vector<16xf32> to vector<16x1xf32>
    %16 = vector.broadcast %15 : vector<16x1xf32> to vector<16x16xf32>
    %17 = arith.subf %13, %16 : vector<16x16xf32>
    %18 = math.exp %17 : vector<16x16xf32>
    %cst_4 = arith.constant dense<0.000000e+00> : vector<16xf32>
    %19 = vector.multi_reduction <add>, %18, %cst_4 [1] : vector<16x16xf32> to vector<16xf32>
    %20 = vector.shape_cast %19 : vector<16xf32> to vector<16x1xf32>
    %21 = arith.truncf %18 : vector<16x16xf32> to vector<16x16xbf16>
    %22 = vector.extract_strided_slice %0 {offsets = [0, 64], sizes = [16, 8], strides = [1, 1]} : vector<16x96xbf16> to vector<16x8xbf16>
    %cst_5 = arith.constant dense<0.000000e+00> : vector<16x8xf32>
    %23 = tpu.matmul %21, %22, %cst_5 {dimension_numbers = #tpu.dot_dimension_numbers<[1], [0], [0], [1], [0, 0, 1, 1], [], []>} : vector<16x16xbf16>, vector<16x8xbf16>, vector<16x8xf32> -> vector<16x8xf32>
    %24 = tpu.reciprocal %20 {approx = true} : vector<16x1xf32> -> vector<16x1xf32>
    %25 = vector.broadcast %24 : vector<16x1xf32> to vector<16x8xf32>
    %26 = arith.mulf %23, %25 : vector<16x8xf32>
    %27 = vector.extract_strided_slice %0 {offsets = [0, 8], sizes = [16, 8], strides = [1, 1]} : vector<16x96xbf16> to vector<16x8xbf16>
    %28 = arith.extf %27 : vector<16x8xbf16> to vector<16x8xf32>
    %29 = vector.extract_strided_slice %2 {offsets = [0, 8], sizes = [16, 8], strides = [1, 1]} : vector<16x32xf32> to vector<16x8xf32>
    %cst_6 = arith.constant dense<0.000000e+00> : vector<16x16xf32>
    %30 = tpu.matmul %28, %29, %cst_6 {dimension_numbers = #tpu.dot_dimension_numbers<[1], [1], [0], [0], [0, 0, 1, 0], [], []>} : vector<16x8xf32>, vector<16x8xf32>, vector<16x16xf32> -> vector<16x16xf32>
    %cst_7 = arith.constant 0.353553385 : f32
    %31 = vector.broadcast %cst_7 : f32 to vector<16x16xf32>
    %32 = arith.mulf %30, %31 : vector<16x16xf32>
    %33 = tpu.iota {dimensions = array<i32: 1>} : vector<16x16xi32>
    %c8_i32_8 = arith.constant 8 : i32
    %34 = vector.broadcast %c8_i32_8 : i32 to vector<16x16xi32>
    %35 = arith.cmpi slt, %33, %34 : vector<16x16xi32>
    %cst_9 = arith.constant -1.000000e+30 : f32
    %36 = vector.broadcast %cst_9 : f32 to vector<16x16xf32>
    %37 = arith.select %35, %32, %36 : vector<16x16xi1>, vector<16x16xf32>
    %cst_10 = arith.constant dense<0xFF800000> : vector<16xf32>
    %38 = vector.multi_reduction <maximumf>, %37, %cst_10 [1] : vector<16x16xf32> to vector<16xf32>
    %39 = vector.shape_cast %38 : vector<16xf32> to vector<16x1xf32>
    %40 = vector.broadcast %39 : vector<16x1xf32> to vector<16x16xf32>
    %41 = arith.subf %37, %40 : vector<16x16xf32>
    %42 = math.exp %41 : vector<16x16xf32>
    %cst_11 = arith.constant dense<0.000000e+00> : vector<16xf32>
    %43 = vector.multi_reduction <add>, %42, %cst_11 [1] : vector<16x16xf32> to vector<16xf32>
    %44 = vector.shape_cast %43 : vector<16xf32> to vector<16x1xf32>
    %45 = arith.truncf %42 : vector<16x16xf32> to vector<16x16xbf16>
    %46 = vector.extract_strided_slice %0 {offsets = [0, 72], sizes = [16, 8], strides = [1, 1]} : vector<16x96xbf16> to vector<16x8xbf16>
    %cst_12 = arith.constant dense<0.000000e+00> : vector<16x8xf32>
    %47 = tpu.matmul %45, %46, %cst_12 {dimension_numbers = #tpu.dot_dimension_numbers<[1], [0], [0], [1], [0, 0, 1, 1], [], []>} : vector<16x16xbf16>, vector<16x8xbf16>, vector<16x8xf32> -> vector<16x8xf32>
    %48 = tpu.reciprocal %44 {approx = true} : vector<16x1xf32> -> vector<16x1xf32>
    %49 = vector.broadcast %48 : vector<16x1xf32> to vector<16x8xf32>
    %50 = arith.mulf %47, %49 : vector<16x8xf32>
    %51 = vector.extract_strided_slice %0 {offsets = [0, 16], sizes = [16, 8], strides = [1, 1]} : vector<16x96xbf16> to vector<16x8xbf16>
    %52 = arith.extf %51 : vector<16x8xbf16> to vector<16x8xf32>
    %53 = vector.extract_strided_slice %2 {offsets = [0, 16], sizes = [16, 8], strides = [1, 1]} : vector<16x32xf32> to vector<16x8xf32>
    %cst_13 = arith.constant dense<0.000000e+00> : vector<16x16xf32>
    %54 = tpu.matmul %52, %53, %cst_13 {dimension_numbers = #tpu.dot_dimension_numbers<[1], [1], [0], [0], [0, 0, 1, 0], [], []>} : vector<16x8xf32>, vector<16x8xf32>, vector<16x16xf32> -> vector<16x16xf32>
    %cst_14 = arith.constant 0.353553385 : f32
    %55 = vector.broadcast %cst_14 : f32 to vector<16x16xf32>
    %56 = arith.mulf %54, %55 : vector<16x16xf32>
    %57 = tpu.iota {dimensions = array<i32: 1>} : vector<16x16xi32>
    %c8_i32_15 = arith.constant 8 : i32
    %58 = vector.broadcast %c8_i32_15 : i32 to vector<16x16xi32>
    %59 = arith.cmpi slt, %57, %58 : vector<16x16xi32>
    %cst_16 = arith.constant -1.000000e+30 : f32
    %60 = vector.broadcast %cst_16 : f32 to vector<16x16xf32>
    %61 = arith.select %59, %56, %60 : vector<16x16xi1>, vector<16x16xf32>
    %cst_17 = arith.constant dense<0xFF800000> : vector<16xf32>
    %62 = vector.multi_reduction <maximumf>, %61, %cst_17 [1] : vector<16x16xf32> to vector<16xf32>
    %63 = vector.shape_cast %62 : vector<16xf32> to vector<16x1xf32>
    %64 = vector.broadcast %63 : vector<16x1xf32> to vector<16x16xf32>
    %65 = arith.subf %61, %64 : vector<16x16xf32>
    %66 = math.exp %65 : vector<16x16xf32>
    %cst_18 = arith.constant dense<0.000000e+00> : vector<16xf32>
    %67 = vector.multi_reduction <add>, %66, %cst_18 [1] : vector<16x16xf32> to vector<16xf32>
    %68 = vector.shape_cast %67 : vector<16xf32> to vector<16x1xf32>
    %69 = arith.truncf %66 : vector<16x16xf32> to vector<16x16xbf16>
    %70 = vector.extract_strided_slice %0 {offsets = [0, 80], sizes = [16, 8], strides = [1, 1]} : vector<16x96xbf16> to vector<16x8xbf16>
    %cst_19 = arith.constant dense<0.000000e+00> : vector<16x8xf32>
    %71 = tpu.matmul %69, %70, %cst_19 {dimension_numbers = #tpu.dot_dimension_numbers<[1], [0], [0], [1], [0, 0, 1, 1], [], []>} : vector<16x16xbf16>, vector<16x8xbf16>, vector<16x8xf32> -> vector<16x8xf32>
    %72 = tpu.reciprocal %68 {approx = true} : vector<16x1xf32> -> vector<16x1xf32>
    %73 = vector.broadcast %72 : vector<16x1xf32> to vector<16x8xf32>
    %74 = arith.mulf %71, %73 : vector<16x8xf32>
    %75 = vector.extract_strided_slice %0 {offsets = [0, 24], sizes = [16, 8], strides = [1, 1]} : vector<16x96xbf16> to vector<16x8xbf16>
    %76 = arith.extf %75 : vector<16x8xbf16> to vector<16x8xf32>
    %77 = vector.extract_strided_slice %2 {offsets = [0, 24], sizes = [16, 8], strides = [1, 1]} : vector<16x32xf32> to vector<16x8xf32>
    %cst_20 = arith.constant dense<0.000000e+00> : vector<16x16xf32>
    %78 = tpu.matmul %76, %77, %cst_20 {dimension_numbers = #tpu.dot_dimension_numbers<[1], [1], [0], [0], [0, 0, 1, 0], [], []>} : vector<16x8xf32>, vector<16x8xf32>, vector<16x16xf32> -> vector<16x16xf32>
    %cst_21 = arith.constant 0.353553385 : f32
    %79 = vector.broadcast %cst_21 : f32 to vector<16x16xf32>
    %80 = arith.mulf %78, %79 : vector<16x16xf32>
    %81 = tpu.iota {dimensions = array<i32: 1>} : vector<16x16xi32>
    %c8_i32_22 = arith.constant 8 : i32
    %82 = vector.broadcast %c8_i32_22 : i32 to vector<16x16xi32>
    %83 = arith.cmpi slt, %81, %82 : vector<16x16xi32>
    %cst_23 = arith.constant -1.000000e+30 : f32
    %84 = vector.broadcast %cst_23 : f32 to vector<16x16xf32>
    %85 = arith.select %83, %80, %84 : vector<16x16xi1>, vector<16x16xf32>
    %cst_24 = arith.constant dense<0xFF800000> : vector<16xf32>
    %86 = vector.multi_reduction <maximumf>, %85, %cst_24 [1] : vector<16x16xf32> to vector<16xf32>
    %87 = vector.shape_cast %86 : vector<16xf32> to vector<16x1xf32>
    %88 = vector.broadcast %87 : vector<16x1xf32> to vector<16x16xf32>
    %89 = arith.subf %85, %88 : vector<16x16xf32>
    %90 = math.exp %89 : vector<16x16xf32>
    %cst_25 = arith.constant dense<0.000000e+00> : vector<16xf32>
    %91 = vector.multi_reduction <add>, %90, %cst_25 [1] : vector<16x16xf32> to vector<16xf32>
    %92 = vector.shape_cast %91 : vector<16xf32> to vector<16x1xf32>
    %93 = arith.truncf %90 : vector<16x16xf32> to vector<16x16xbf16>
    %94 = vector.extract_strided_slice %0 {offsets = [0, 88], sizes = [16, 8], strides = [1, 1]} : vector<16x96xbf16> to vector<16x8xbf16>
    %cst_26 = arith.constant dense<0.000000e+00> : vector<16x8xf32>
    %95 = tpu.matmul %93, %94, %cst_26 {dimension_numbers = #tpu.dot_dimension_numbers<[1], [0], [0], [1], [0, 0, 1, 1], [], []>} : vector<16x16xbf16>, vector<16x8xbf16>, vector<16x8xf32> -> vector<16x8xf32>
    %96 = tpu.reciprocal %92 {approx = true} : vector<16x1xf32> -> vector<16x1xf32>
    %97 = vector.broadcast %96 : vector<16x1xf32> to vector<16x8xf32>
    %98 = arith.mulf %95, %97 : vector<16x8xf32>
    %99 = tpu.concatenate %26, %50, %74, %98 in 1 : vector<16x8xf32>, vector<16x8xf32>, vector<16x8xf32>, vector<16x8xf32> -> vector<16x32xf32>
    %100 = arith.truncf %99 : vector<16x32xf32> to vector<16x32xbf16>
    %c0_27 = arith.constant 0 : index
    %c0_28 = arith.constant 0 : index
    %101 = vector.load %arg3[%c0_27, %c0_28] : memref<32x32xbf16, #tpu.memory_space<vmem>>, vector<32x32xbf16>
    %cst_29 = arith.constant dense<0.000000e+00> : vector<16x32xf32>
    %102 = tpu.matmul %100, %101, %cst_29 {dimension_numbers = #tpu.dot_dimension_numbers<[1], [0], [0], [1], [0, 0, 1, 1], [], []>} : vector<16x32xbf16>, vector<32x32xbf16>, vector<16x32xf32> -> vector<16x32xf32>
    %c0_30 = arith.constant 0 : index
    %c0_31 = arith.constant 0 : index
    %103 = vector.load %arg4[%c0_30, %c0_31] : memref<1x32xf32, #tpu.memory_space<vmem>>, vector<1x32xf32>
    %104 = vector.broadcast %103 : vector<1x32xf32> to vector<16x32xf32>
    %105 = arith.addf %102, %104 : vector<16x32xf32>
    %c0_32 = arith.constant 0 : index
    %c0_33 = arith.constant 0 : index
    %106 = vector.load %arg2[%c0_32, %c0_33] : memref<16x32xf32, #tpu.memory_space<vmem>>, vector<16x32xf32>
    %107 = arith.addf %105, %106 : vector<16x32xf32>
    %c0_34 = arith.constant 0 : index
    %c0_35 = arith.constant 0 : index
    %108 = vector.load %arg5[%c0_34, %c0_35] : memref<1x32xf32, #tpu.memory_space<vmem>>, vector<1x32xf32>
    %c0_36 = arith.constant 0 : index
    %c0_37 = arith.constant 0 : index
    %109 = vector.load %arg6[%c0_36, %c0_37] : memref<1x32xf32, #tpu.memory_space<vmem>>, vector<1x32xf32>
    %cst_38 = arith.constant dense<0.000000e+00> : vector<16xf32>
    %110 = vector.multi_reduction <add>, %107, %cst_38 [1] : vector<16x32xf32> to vector<16xf32>
    %111 = vector.shape_cast %110 : vector<16xf32> to vector<16x1xf32>
    %cst_39 = arith.constant 3.200000e+01 : f32
    %112 = vector.broadcast %cst_39 : f32 to vector<16x1xf32>
    %113 = arith.divf %111, %112 : vector<16x1xf32>
    %114 = vector.broadcast %113 : vector<16x1xf32> to vector<16x32xf32>
    %115 = arith.subf %107, %114 : vector<16x32xf32>
    %116 = arith.mulf %115, %115 : vector<16x32xf32>
    %cst_40 = arith.constant dense<0.000000e+00> : vector<16xf32>
    %117 = vector.multi_reduction <add>, %116, %cst_40 [1] : vector<16x32xf32> to vector<16xf32>
    %118 = vector.shape_cast %117 : vector<16xf32> to vector<16x1xf32>
    %cst_41 = arith.constant 3.200000e+01 : f32
    %119 = vector.broadcast %cst_41 : f32 to vector<16x1xf32>
    %120 = arith.divf %118, %119 : vector<16x1xf32>
    %121 = vector.broadcast %113 : vector<16x1xf32> to vector<16x32xf32>
    %122 = arith.subf %107, %121 : vector<16x32xf32>
    %cst_42 = arith.constant 9.99999974E-6 : f32
    %123 = vector.broadcast %cst_42 : f32 to vector<16x1xf32>
    %124 = arith.addf %120, %123 : vector<16x1xf32>
    %125 = math.rsqrt %124 : vector<16x1xf32>
    %126 = vector.broadcast %125 : vector<16x1xf32> to vector<16x32xf32>
    %127 = arith.mulf %122, %126 : vector<16x32xf32>
    %128 = vector.broadcast %108 : vector<1x32xf32> to vector<16x32xf32>
    %129 = arith.mulf %127, %128 : vector<16x32xf32>
    %130 = vector.broadcast %109 : vector<1x32xf32> to vector<16x32xf32>
    %131 = arith.addf %129, %130 : vector<16x32xf32>
    %c0_43 = arith.constant 0 : index
    %c0_44 = arith.constant 0 : index
    %132 = vector.load %arg7[%c0_43, %c0_44] : memref<16x32xf32, #tpu.memory_space<vmem>>, vector<16x32xf32>
    tpu.vector_store %arg7[%c0_43, %c0_44], %131 {strides = array<i32>} : memref<16x32xf32, #tpu.memory_space<vmem>>, vector<16x32xf32>,
    return
  }
  func.func @transform_0(%arg0: i32) -> (i32, i32) {
    %c0_i32 = arith.constant 0 : i32
    %c0_i32_0 = arith.constant 0 : i32
    return %arg0, %c0_i32 : i32, i32
  }
  func.func @transform_1(%arg0: i32) -> (i32, i32) {
    %c0_i32 = arith.constant 0 : i32
    %c0_i32_0 = arith.constant 0 : i32
    return %arg0, %c0_i32 : i32, i32
  }
  func.func @transform_2(%arg0: i32) -> (i32, i32) {
    %c0_i32 = arith.constant 0 : i32
    %c0_i32_0 = arith.constant 0 : i32
    %c0_i32_1 = arith.constant 0 : i32
    return %c0_i32, %c0_i32_0 : i32, i32
  }
  func.func @transform_3(%arg0: i32) -> (i32, i32) {
    %c0_i32 = arith.constant 0 : i32
    %c0_i32_0 = arith.constant 0 : i32
    %c0_i32_1 = arith.constant 0 : i32
    return %c0_i32, %c0_i32_0 : i32, i32
  }
  func.func @transform_4(%arg0: i32) -> (i32, i32) {
    %c0_i32 = arith.constant 0 : i32
    %c0_i32_0 = arith.constant 0 : i32
    %c0_i32_1 = arith.constant 0 : i32
    return %c0_i32, %c0_i32_0 : i32, i32
  }
  func.func @transform_5(%arg0: i32) -> (i32, i32) {
    %c0_i32 = arith.constant 0 : i32
    %c0_i32_0 = arith.constant 0 : i32
    %c0_i32_1 = arith.constant 0 : i32
    return %c0_i32, %c0_i32_0 : i32, i32
  }
  func.func @transform_6(%arg0: i32) -> (i32, i32) {
    %c0_i32 = arith.constant 0 : i32
    %c0_i32_0 = arith.constant 0 : i32
    return %arg0, %c0_i32 : i32, i32
  }
}

module attributes {stable_mosaic.version = 11 : i64} {
  func.func @_linear_kernel(%arg0: i32, %arg1: i32, %arg2: memref<32x4xf32, #tpu.memory_space<vmem>>, %arg3: memref<4x32xbf16, #tpu.memory_space<vmem>>, %arg4: memref<1x32xf32, #tpu.memory_space<vmem>>, %arg5: memref<32x32xf32, #tpu.memory_space<vmem>>) attributes {dimension_semantics = [#tpu.dimension_semantics<parallel>, #tpu.dimension_semantics<parallel>], iteration_bounds = array<i64: 1, 1>, scalar_prefetch = 0 : i64, scratch_operands = 0 : i64, tpu.core_type = #tpu.core_type<tc>, window_params = [{transform_indices = @transform_0, window_bounds = array<i64: 32, 4>}, {transform_indices = @transform_1, window_bounds = array<i64: 4, 32>}, {transform_indices = @transform_2, window_bounds = array<i64: 1, 32>}, {transform_indices = @transform_3, window_bounds = array<i64: 32, 32>}]} {
    %c0 = arith.constant 0 : index
    %c0_0 = arith.constant 0 : index
    %0 = vector.load %arg2[%c0, %c0_0] : memref<32x4xf32, #tpu.memory_space<vmem>>, vector<32x4xf32>
    %1 = arith.truncf %0 : vector<32x4xf32> to vector<32x4xbf16>
    %c0_1 = arith.constant 0 : index
    %c0_2 = arith.constant 0 : index
    %2 = vector.load %arg3[%c0_1, %c0_2] : memref<4x32xbf16, #tpu.memory_space<vmem>>, vector<4x32xbf16>
    %cst = arith.constant dense<0.000000e+00> : vector<32x32xf32>
    %3 = tpu.matmul %1, %2, %cst {dimension_numbers = #tpu.dot_dimension_numbers<[1], [0], [0], [1], [0, 0, 1, 1], [], []>} : vector<32x4xbf16>, vector<4x32xbf16>, vector<32x32xf32> -> vector<32x32xf32>
    %c0_3 = arith.constant 0 : index
    %c0_4 = arith.constant 0 : index
    %4 = vector.load %arg4[%c0_3, %c0_4] : memref<1x32xf32, #tpu.memory_space<vmem>>, vector<1x32xf32>
    %5 = vector.broadcast %4 : vector<1x32xf32> to vector<32x32xf32>
    %6 = arith.addf %3, %5 : vector<32x32xf32>
    %c0_5 = arith.constant 0 : index
    %c0_6 = arith.constant 0 : index
    %7 = vector.load %arg5[%c0_5, %c0_6] : memref<32x32xf32, #tpu.memory_space<vmem>>, vector<32x32xf32>
    tpu.vector_store %arg5[%c0_5, %c0_6], %6 {strides = array<i32>} : memref<32x32xf32, #tpu.memory_space<vmem>>, vector<32x32xf32>,
    return
  }
  func.func @transform_0(%arg0: i32, %arg1: i32) -> (i32, i32) {
    %c0_i32 = arith.constant 0 : i32
    %c0_i32_0 = arith.constant 0 : i32
    return %arg0, %c0_i32 : i32, i32
  }
  func.func @transform_1(%arg0: i32, %arg1: i32) -> (i32, i32) {
    %c0_i32 = arith.constant 0 : i32
    %c0_i32_0 = arith.constant 0 : i32
    return %c0_i32, %arg1 : i32, i32
  }
  func.func @transform_2(%arg0: i32, %arg1: i32) -> (i32, i32) {
    %c0_i32 = arith.constant 0 : i32
    %c0_i32_0 = arith.constant 0 : i32
    return %c0_i32, %arg1 : i32, i32
  }
  func.func @transform_3(%arg0: i32, %arg1: i32) -> (i32, i32) {
    %c0_i32 = arith.constant 0 : i32
    return %arg0, %arg1 : i32, i32
  }
}

module attributes {stable_mosaic.version = 11 : i64} {
  func.func @_linear_kernel(%arg0: i32, %arg1: i32, %arg2: memref<32x32xf32, #tpu.memory_space<vmem>>, %arg3: memref<32x96xbf16, #tpu.memory_space<vmem>>, %arg4: memref<1x96xf32, #tpu.memory_space<vmem>>, %arg5: memref<32x96xbf16, #tpu.memory_space<vmem>>) attributes {dimension_semantics = [#tpu.dimension_semantics<parallel>, #tpu.dimension_semantics<parallel>], iteration_bounds = array<i64: 1, 1>, scalar_prefetch = 0 : i64, scratch_operands = 0 : i64, tpu.core_type = #tpu.core_type<tc>, window_params = [{transform_indices = @transform_0, window_bounds = array<i64: 32, 32>}, {transform_indices = @transform_1, window_bounds = array<i64: 32, 96>}, {transform_indices = @transform_2, window_bounds = array<i64: 1, 96>}, {transform_indices = @transform_3, window_bounds = array<i64: 32, 96>}]} {
    %c0 = arith.constant 0 : index
    %c0_0 = arith.constant 0 : index
    %0 = vector.load %arg2[%c0, %c0_0] : memref<32x32xf32, #tpu.memory_space<vmem>>, vector<32x32xf32>
    %1 = arith.truncf %0 : vector<32x32xf32> to vector<32x32xbf16>
    %c0_1 = arith.constant 0 : index
    %c0_2 = arith.constant 0 : index
    %2 = vector.load %arg3[%c0_1, %c0_2] : memref<32x96xbf16, #tpu.memory_space<vmem>>, vector<32x96xbf16>
    %cst = arith.constant dense<0.000000e+00> : vector<32x96xf32>
    %3 = tpu.matmul %1, %2, %cst {dimension_numbers = #tpu.dot_dimension_numbers<[1], [0], [0], [1], [0, 0, 1, 1], [], []>} : vector<32x32xbf16>, vector<32x96xbf16>, vector<32x96xf32> -> vector<32x96xf32>
    %c0_3 = arith.constant 0 : index
    %c0_4 = arith.constant 0 : index
    %4 = vector.load %arg4[%c0_3, %c0_4] : memref<1x96xf32, #tpu.memory_space<vmem>>, vector<1x96xf32>
    %5 = vector.broadcast %4 : vector<1x96xf32> to vector<32x96xf32>
    %6 = arith.addf %3, %5 : vector<32x96xf32>
    %7 = arith.truncf %6 : vector<32x96xf32> to vector<32x96xbf16>
    %c0_5 = arith.constant 0 : index
    %c0_6 = arith.constant 0 : index
    %8 = vector.load %arg5[%c0_5, %c0_6] : memref<32x96xbf16, #tpu.memory_space<vmem>>, vector<32x96xbf16>
    tpu.vector_store %arg5[%c0_5, %c0_6], %7 {strides = array<i32>} : memref<32x96xbf16, #tpu.memory_space<vmem>>, vector<32x96xbf16>,
    return
  }
  func.func @transform_0(%arg0: i32, %arg1: i32) -> (i32, i32) {
    %c0_i32 = arith.constant 0 : i32
    %c0_i32_0 = arith.constant 0 : i32
    return %arg0, %c0_i32 : i32, i32
  }
  func.func @transform_1(%arg0: i32, %arg1: i32) -> (i32, i32) {
    %c0_i32 = arith.constant 0 : i32
    %c0_i32_0 = arith.constant 0 : i32
    return %c0_i32, %arg1 : i32, i32
  }
  func.func @transform_2(%arg0: i32, %arg1: i32) -> (i32, i32) {
    %c0_i32 = arith.constant 0 : i32
    %c0_i32_0 = arith.constant 0 : i32
    return %c0_i32, %arg1 : i32, i32
  }
  func.func @transform_3(%arg0: i32, %arg1: i32) -> (i32, i32) {
    %c0_i32 = arith.constant 0 : i32
    return %arg0, %arg1 : i32, i32
  }
}

module attributes {stable_mosaic.version = 11 : i64} {
  func.func @_ffn_kernel(%arg0: i32, %arg1: memref<32x32xf32, #tpu.memory_space<vmem>>, %arg2: memref<32x128xbf16, #tpu.memory_space<vmem>>, %arg3: memref<1x128xf32, #tpu.memory_space<vmem>>, %arg4: memref<128x32xbf16, #tpu.memory_space<vmem>>, %arg5: memref<1x32xf32, #tpu.memory_space<vmem>>, %arg6: memref<1x32xf32, #tpu.memory_space<vmem>>, %arg7: memref<1x32xf32, #tpu.memory_space<vmem>>, %arg8: memref<32x32xf32, #tpu.memory_space<vmem>>) attributes {dimension_semantics = [#tpu.dimension_semantics<parallel>], iteration_bounds = array<i64: 1>, scalar_prefetch = 0 : i64, scratch_operands = 0 : i64, tpu.core_type = #tpu.core_type<tc>, window_params = [{transform_indices = @transform_0, window_bounds = array<i64: 32, 32>}, {pipeline_mode = #tpu.pipeline_mode<synchronous>, transform_indices = @transform_1, window_bounds = array<i64: 32, 128>}, {pipeline_mode = #tpu.pipeline_mode<synchronous>, transform_indices = @transform_2, window_bounds = array<i64: 1, 128>}, {pipeline_mode = #tpu.pipeline_mode<synchronous>, transform_indices = @transform_3, window_bounds = array<i64: 128, 32>}, {pipeline_mode = #tpu.pipeline_mode<synchronous>, transform_indices = @transform_4, window_bounds = array<i64: 1, 32>}, {pipeline_mode = #tpu.pipeline_mode<synchronous>, transform_indices = @transform_5, window_bounds = array<i64: 1, 32>}, {pipeline_mode = #tpu.pipeline_mode<synchronous>, transform_indices = @transform_6, window_bounds = array<i64: 1, 32>}, {transform_indices = @transform_7, window_bounds = array<i64: 32, 32>}]} {
    %c0 = arith.constant 0 : index
    %c0_0 = arith.constant 0 : index
    %0 = vector.load %arg1[%c0, %c0_0] : memref<32x32xf32, #tpu.memory_space<vmem>>, vector<32x32xf32>
    %1 = arith.truncf %0 : vector<32x32xf32> to vector<32x32xbf16>
    %c0_1 = arith.constant 0 : index
    %c0_2 = arith.constant 0 : index
    %2 = vector.load %arg2[%c0_1, %c0_2] : memref<32x128xbf16, #tpu.memory_space<vmem>>, vector<32x128xbf16>
    %cst = arith.constant dense<0.000000e+00> : vector<32x128xf32>
    %3 = tpu.matmul %1, %2, %cst {dimension_numbers = #tpu.dot_dimension_numbers<[1], [0], [0], [1], [0, 0, 1, 1], [], []>} : vector<32x32xbf16>, vector<32x128xbf16>, vector<32x128xf32> -> vector<32x128xf32>
    %c0_3 = arith.constant 0 : index
    %c0_4 = arith.constant 0 : index
    %4 = vector.load %arg3[%c0_3, %c0_4] : memref<1x128xf32, #tpu.memory_space<vmem>>, vector<1x128xf32>
    %5 = vector.broadcast %4 : vector<1x128xf32> to vector<32x128xf32>
    %6 = arith.addf %3, %5 : vector<32x128xf32>
    %cst_5 = arith.constant 0.000000e+00 : f32
    %7 = vector.broadcast %cst_5 : f32 to vector<32x128xf32>
    %8 = arith.maximumf %6, %7 : vector<32x128xf32>
    %9 = arith.truncf %8 : vector<32x128xf32> to vector<32x128xbf16>
    %c0_6 = arith.constant 0 : index
    %c0_7 = arith.constant 0 : index
    %10 = vector.load %arg4[%c0_6, %c0_7] : memref<128x32xbf16, #tpu.memory_space<vmem>>, vector<128x32xbf16>
    %cst_8 = arith.constant dense<0.000000e+00> : vector<32x32xf32>
    %11 = tpu.matmul %9, %10, %cst_8 {dimension_numbers = #tpu.dot_dimension_numbers<[1], [0], [0], [1], [0, 0, 1, 1], [], []>} : vector<32x128xbf16>, vector<128x32xbf16>, vector<32x32xf32> -> vector<32x32xf32>
    %c0_9 = arith.constant 0 : index
    %c0_10 = arith.constant 0 : index
    %12 = vector.load %arg5[%c0_9, %c0_10] : memref<1x32xf32, #tpu.memory_space<vmem>>, vector<1x32xf32>
    %13 = vector.broadcast %12 : vector<1x32xf32> to vector<32x32xf32>
    %14 = arith.addf %11, %13 : vector<32x32xf32>
    %15 = arith.addf %14, %0 : vector<32x32xf32>
    %c0_11 = arith.constant 0 : index
    %c0_12 = arith.constant 0 : index
    %16 = vector.load %arg6[%c0_11, %c0_12] : memref<1x32xf32, #tpu.memory_space<vmem>>, vector<1x32xf32>
    %c0_13 = arith.constant 0 : index
    %c0_14 = arith.constant 0 : index
    %17 = vector.load %arg7[%c0_13, %c0_14] : memref<1x32xf32, #tpu.memory_space<vmem>>, vector<1x32xf32>
    %cst_15 = arith.constant dense<0.000000e+00> : vector<32xf32>
    %18 = vector.multi_reduction <add>, %15, %cst_15 [1] : vector<32x32xf32> to vector<32xf32>
    %19 = vector.shape_cast %18 : vector<32xf32> to vector<32x1xf32>
    %cst_16 = arith.constant 3.200000e+01 : f32
    %20 = vector.broadcast %cst_16 : f32 to vector<32x1xf32>
    %21 = arith.divf %19, %20 : vector<32x1xf32>
    %22 = vector.broadcast %21 : vector<32x1xf32> to vector<32x32xf32>
    %23 = arith.subf %15, %22 : vector<32x32xf32>
    %24 = arith.mulf %23, %23 : vector<32x32xf32>
    %cst_17 = arith.constant dense<0.000000e+00> : vector<32xf32>
    %25 = vector.multi_reduction <add>, %24, %cst_17 [1] : vector<32x32xf32> to vector<32xf32>
    %26 = vector.shape_cast %25 : vector<32xf32> to vector<32x1xf32>
    %cst_18 = arith.constant 3.200000e+01 : f32
    %27 = vector.broadcast %cst_18 : f32 to vector<32x1xf32>
    %28 = arith.divf %26, %27 : vector<32x1xf32>
    %29 = vector.broadcast %21 : vector<32x1xf32> to vector<32x32xf32>
    %30 = arith.subf %15, %29 : vector<32x32xf32>
    %cst_19 = arith.constant 9.99999974E-6 : f32
    %31 = vector.broadcast %cst_19 : f32 to vector<32x1xf32>
    %32 = arith.addf %28, %31 : vector<32x1xf32>
    %33 = math.rsqrt %32 : vector<32x1xf32>
    %34 = vector.broadcast %33 : vector<32x1xf32> to vector<32x32xf32>
    %35 = arith.mulf %30, %34 : vector<32x32xf32>
    %36 = vector.broadcast %16 : vector<1x32xf32> to vector<32x32xf32>
    %37 = arith.mulf %35, %36 : vector<32x32xf32>
    %38 = vector.broadcast %17 : vector<1x32xf32> to vector<32x32xf32>
    %39 = arith.addf %37, %38 : vector<32x32xf32>
    %c0_20 = arith.constant 0 : index
    %c0_21 = arith.constant 0 : index
    %40 = vector.load %arg8[%c0_20, %c0_21] : memref<32x32xf32, #tpu.memory_space<vmem>>, vector<32x32xf32>
    tpu.vector_store %arg8[%c0_20, %c0_21], %39 {strides = array<i32>} : memref<32x32xf32, #tpu.memory_space<vmem>>, vector<32x32xf32>,
    return
  }
  func.func @transform_0(%arg0: i32) -> (i32, i32) {
    %c0_i32 = arith.constant 0 : i32
    %c0_i32_0 = arith.constant 0 : i32
    return %arg0, %c0_i32 : i32, i32
  }
  func.func @transform_1(%arg0: i32) -> (i32, i32) {
    %c0_i32 = arith.constant 0 : i32
    %c0_i32_0 = arith.constant 0 : i32
    %c0_i32_1 = arith.constant 0 : i32
    return %c0_i32, %c0_i32_0 : i32, i32
  }
  func.func @transform_2(%arg0: i32) -> (i32, i32) {
    %c0_i32 = arith.constant 0 : i32
    %c0_i32_0 = arith.constant 0 : i32
    %c0_i32_1 = arith.constant 0 : i32
    return %c0_i32, %c0_i32_0 : i32, i32
  }
  func.func @transform_3(%arg0: i32) -> (i32, i32) {
    %c0_i32 = arith.constant 0 : i32
    %c0_i32_0 = arith.constant 0 : i32
    %c0_i32_1 = arith.constant 0 : i32
    return %c0_i32, %c0_i32_0 : i32, i32
  }
  func.func @transform_4(%arg0: i32) -> (i32, i32) {
    %c0_i32 = arith.constant 0 : i32
    %c0_i32_0 = arith.constant 0 : i32
    %c0_i32_1 = arith.constant 0 : i32
    return %c0_i32, %c0_i32_0 : i32, i32
  }
  func.func @transform_5(%arg0: i32) -> (i32, i32) {
    %c0_i32 = arith.constant 0 : i32
    %c0_i32_0 = arith.constant 0 : i32
    %c0_i32_1 = arith.constant 0 : i32
    return %c0_i32, %c0_i32_0 : i32, i32
  }
  func.func @transform_6(%arg0: i32) -> (i32, i32) {
    %c0_i32 = arith.constant 0 : i32
    %c0_i32_0 = arith.constant 0 : i32
    %c0_i32_1 = arith.constant 0 : i32
    return %c0_i32, %c0_i32_0 : i32, i32
  }
  func.func @transform_7(%arg0: i32) -> (i32, i32) {
    %c0_i32 = arith.constant 0 : i32
    %c0_i32_0 = arith.constant 0 : i32
    return %arg0, %c0_i32 : i32, i32
  }
}

module attributes {stable_mosaic.version = 11 : i64} {
  func.func @_linear_kernel(%arg0: i32, %arg1: i32, %arg2: memref<2x32xf32, #tpu.memory_space<vmem>>, %arg3: memref<32x8xbf16, #tpu.memory_space<vmem>>, %arg4: memref<1x8xf32, #tpu.memory_space<vmem>>, %arg5: memref<2x8xf32, #tpu.memory_space<vmem>>) attributes {dimension_semantics = [#tpu.dimension_semantics<parallel>, #tpu.dimension_semantics<parallel>], iteration_bounds = array<i64: 1, 1>, scalar_prefetch = 0 : i64, scratch_operands = 0 : i64, tpu.core_type = #tpu.core_type<tc>, window_params = [{transform_indices = @transform_0, window_bounds = array<i64: 2, 32>}, {transform_indices = @transform_1, window_bounds = array<i64: 32, 8>}, {transform_indices = @transform_2, window_bounds = array<i64: 1, 8>}, {transform_indices = @transform_3, window_bounds = array<i64: 2, 8>}]} {
    %c0 = arith.constant 0 : index
    %c0_0 = arith.constant 0 : index
    %0 = vector.load %arg2[%c0, %c0_0] : memref<2x32xf32, #tpu.memory_space<vmem>>, vector<2x32xf32>
    %1 = arith.truncf %0 : vector<2x32xf32> to vector<2x32xbf16>
    %c0_1 = arith.constant 0 : index
    %c0_2 = arith.constant 0 : index
    %2 = vector.load %arg3[%c0_1, %c0_2] : memref<32x8xbf16, #tpu.memory_space<vmem>>, vector<32x8xbf16>
    %cst = arith.constant dense<0.000000e+00> : vector<2x8xf32>
    %3 = tpu.matmul %1, %2, %cst {dimension_numbers = #tpu.dot_dimension_numbers<[1], [0], [0], [1], [0, 0, 1, 1], [], []>} : vector<2x32xbf16>, vector<32x8xbf16>, vector<2x8xf32> -> vector<2x8xf32>
    %c0_3 = arith.constant 0 : index
    %c0_4 = arith.constant 0 : index
    %4 = vector.load %arg4[%c0_3, %c0_4] : memref<1x8xf32, #tpu.memory_space<vmem>>, vector<1x8xf32>
    %5 = vector.broadcast %4 : vector<1x8xf32> to vector<2x8xf32>
    %6 = arith.addf %3, %5 : vector<2x8xf32>
    %c0_5 = arith.constant 0 : index
    %c0_6 = arith.constant 0 : index
    %7 = vector.load %arg5[%c0_5, %c0_6] : memref<2x8xf32, #tpu.memory_space<vmem>>, vector<2x8xf32>
    tpu.vector_store %arg5[%c0_5, %c0_6], %6 {strides = array<i32>} : memref<2x8xf32, #tpu.memory_space<vmem>>, vector<2x8xf32>,
    return
  }
  func.func @transform_0(%arg0: i32, %arg1: i32) -> (i32, i32) {
    %c0_i32 = arith.constant 0 : i32
    %c0_i32_0 = arith.constant 0 : i32
    return %arg0, %c0_i32 : i32, i32
  }
  func.func @transform_1(%arg0: i32, %arg1: i32) -> (i32, i32) {
    %c0_i32 = arith.constant 0 : i32
    %c0_i32_0 = arith.constant 0 : i32
    return %c0_i32, %arg1 : i32, i32
  }
  func.func @transform_2(%arg0: i32, %arg1: i32) -> (i32, i32) {
    %c0_i32 = arith.constant 0 : i32
    %c0_i32_0 = arith.constant 0 : i32
    return %c0_i32, %arg1 : i32, i32
  }
  func.func @transform_3(%arg0: i32, %arg1: i32) -> (i32, i32) {
    %c0_i32 = arith.constant 0 : i32
    return %arg0, %arg1 : i32, i32
  }
}

</mosaic_0001>

<llo_original>
// kernel: transformer_forward.9
$region0: #{transformer_forward.9}
  #allocation0 [shape = 'u32[]', space=smem, size = 0x4, offset = 0x4, fixed_abs, tag = 'smem constant byte address 0x4 - core index']
  #allocation1 [shape = 'u32[72,128]{1,0:T(1,128)}', space=vmem, size = 0x9000, scoped, tag = 'internal scratch']
  %s0 = inlined_call_operand.vmem [shape: f32[32,32], index: 0, kind: input, shape index: {}]
  %s1 = inlined_call_operand.vmem [shape: bf16[32,96], index: 1, kind: input, shape index: {}]
  %s2 = inlined_call_operand.vmem [shape: f32[1,96], index: 2, kind: input, shape index: {}]
  %s3 = inlined_call_operand.vmem [shape: bf16[32,96], index: 3, kind: output, shape index: {}]
  %s4 = sld [smem:[#allocation0]]
  $region22: #{transformer_forward.9} parent=0
    _
  %s6 = ssub.s32 1, %s4
  %s7 = scalar_select 0, %s6, %s4
  // Predicated region
  $region2: #{transformer_forward.9} parent=0 // pred_check
    _
  $region3: #{transformer_forward.9} parent=0 // pred_check_branch
    %9 = sbr.rel (0) target = $region5
  $region4: #{transformer_forward.9} parent=0 // pred_region
    _
  $region5: #{transformer_forward.9} parent=0 // pred_fallthru
    _
  // Predicated region
  $region6: #{transformer_forward.9} parent=0 // pred_check
    _
  $region7: #{transformer_forward.9} parent=0 // pred_check_branch
    %11 = sbr.rel (0) target = $region9
  $region8: #{transformer_forward.9} parent=0 // pred_region
    _
  $region9: #{transformer_forward.9} parent=0 // pred_fallthru
    _
  // Predicated region
  $region10: #{transformer_forward.9} parent=0 // pred_check
    _
  $region11: #{transformer_forward.9} parent=0 // pred_check_branch
    %13 = sbr.rel (0) target = $region13
  $region12: #{transformer_forward.9} parent=0 // pred_region
    _
  $region13: #{transformer_forward.9} parent=0 // pred_fallthru
    _
  %v15 = vld [vmem:[%s0] sm:$0xff]
  %v16 = vld [vmem:[%s0 + $0x8] sm:$0xff]
  %v17 = vld [vmem:[%s0 + $0x10] sm:$0xff]
  %v18 = vld [vmem:[%s0 + $0x18] sm:$0xff]
  %v19 = vpack.c.bf16 %v16, %v15
  %v20 = vpack.c.bf16 %v18, %v17
  %v21 = vld [vmem:[%s1] sm:$0xf]
  %v22 = vld [vmem:[%s1 + $0x4] sm:$0xf]
  %v23 = vld [vmem:[%s1 + $0x8] sm:$0xf]
  %v24 = vld [vmem:[%s1 + $0xc] sm:$0xf]
  %v25 = vld [vmem:[%s2] sm:$0x1]
  %v27 = vperm.slane %v25, 0
  %v33 = vunpack.c.l.b16 %v21
  %v34 = vunpack.c.l.b16 %v22
  %v35 = vunpack.c.l.b16 %v23
  %v36 = vunpack.c.l.b16 %v24
  %v37 = vpack.c.b16 %v34, %v33
  %v38 = vpack.c.b16 %v36, %v35
  %vm41 = vcmask 261120
  %v43 = vsel %vm41, %v19, 0
  %v46 = vsel %vm41, %v20, 0
  %48 = vmatpush.bf16.msra.mxu0 0
  %49 = vmatpush.bf16.msra.mxu0 0
  %50 = vmatpush.bf16.msra.mxu0 0
  %51 = vmatpush.bf16.msra.mxu0 0
  %52 = vmatpush.bf16.msra.mxu0 0
  %53 = vmatpush.bf16.msra.mxu0 0
  %54 = vmatpush.bf16.msra.mxu0 %v38
  %55 = vmatpush.bf16.msra.mxu0 %v37
  %56 = vmatmul.bf16.gmra.mxu0 %v43
  %v57 = vpop.f32.mrf.mxu0
  %v58 = vadd.f32 %v27, %v57
  %v59 = vpop.f32.mrf.mxu0
  %v60 = vadd.f32 %v27, %v59
  %61 = vmatmul.bf16.gmra.mxu0 %v46
  %v62 = vpop.f32.mrf.mxu0
  %v63 = vadd.f32 %v27, %v62
  %v64 = vpop.f32.mrf.mxu0
  %v65 = vadd.f32 %v27, %v64
  %66 = vdwg.mxu0
  %v67 = vpack.c.bf16 %v58, %v58
  %v68 = vpack.c.bf16 %v60, %v60
  %v69 = vpack.c.bf16 %v63, %v63
  %v70 = vpack.c.bf16 %v65, %v65
  %vm71 = vcmask 781312
  %72 = vst.msk [vmem:[%s3] sm:$0xf] %vm71, %v67
  %73 = vst.msk [vmem:[%s3 + $0x4] sm:$0xf] %vm71, %v68
  %74 = vst.msk [vmem:[%s3 + $0x8] sm:$0xf] %vm71, %v69
  %75 = vst.msk [vmem:[%s3 + $0xc] sm:$0xf] %vm71, %v70
  // Predicated region
  $region14: #{transformer_forward.9} parent=0 // pred_check
    _
  $region15: #{transformer_forward.9} parent=0 // pred_check_branch
    %77 = sbr.rel (0) target = $region17
  $region16: #{transformer_forward.9} parent=0 // pred_region
    _
  $region17: #{transformer_forward.9} parent=0 // pred_fallthru
    _
  // Predicated region
  $region18: #{transformer_forward.9} parent=0 // pred_check
    _
  $region19: #{transformer_forward.9} parent=0 // pred_check_branch
    %79 = sbr.rel (0) target = $region21
  $region20: #{transformer_forward.9} parent=0 // pred_region
    _
  $region21: #{transformer_forward.9} parent=0 // pred_fallthru
    _

// kernel: transformer_forward.8
$region0: #{transformer_forward.8}
  #allocation0 [shape = 'u32[]', space=smem, size = 0x4, offset = 0x4, fixed_abs, tag = 'smem constant byte address 0x4 - core index']
  #allocation1 [shape = 'u32[72,128]{1,0:T(1,128)}', space=vmem, size = 0x9000, scoped, tag = 'internal scratch']
  %s0 = inlined_call_operand.vmem [shape: f32[32,4], index: 0, kind: input, shape index: {}]
  %s1 = inlined_call_operand.vmem [shape: bf16[4,32], index: 1, kind: input, shape index: {}]
  %s2 = inlined_call_operand.vmem [shape: f32[1,32], index: 2, kind: input, shape index: {}]
  %s3 = inlined_call_operand.vmem [shape: f32[32,32], index: 3, kind: output, shape index: {}]
  %s4 = sld [smem:[#allocation0]]
  $region22: #{transformer_forward.8} parent=0
    _
  %s6 = ssub.s32 1, %s4
  %s7 = scalar_select 0, %s6, %s4
  // Predicated region
  $region2: #{transformer_forward.8} parent=0 // pred_check
    _
  $region3: #{transformer_forward.8} parent=0 // pred_check_branch
    %9 = sbr.rel (0) target = $region5
  $region4: #{transformer_forward.8} parent=0 // pred_region
    _
  $region5: #{transformer_forward.8} parent=0 // pred_fallthru
    _
  // Predicated region
  $region6: #{transformer_forward.8} parent=0 // pred_check
    _
  $region7: #{transformer_forward.8} parent=0 // pred_check_branch
    %11 = sbr.rel (0) target = $region9
  $region8: #{transformer_forward.8} parent=0 // pred_region
    _
  $region9: #{transformer_forward.8} parent=0 // pred_fallthru
    _
  // Predicated region
  $region10: #{transformer_forward.8} parent=0 // pred_check
    _
  $region11: #{transformer_forward.8} parent=0 // pred_check_branch
    %13 = sbr.rel (0) target = $region13
  $region12: #{transformer_forward.8} parent=0 // pred_region
    _
  $region13: #{transformer_forward.8} parent=0 // pred_fallthru
    _
  %v15 = vld [vmem:[%s0] sm:$0xff]
  %v16 = vld [vmem:[%s0 + $0x8] sm:$0xff]
  %v17 = vld [vmem:[%s0 + $0x10] sm:$0xff]
  %v18 = vld [vmem:[%s0 + $0x18] sm:$0xff]
  %v19 = vpack.c.bf16 %v16, %v15
  %v20 = vpack.c.bf16 %v18, %v17
  %v21 = vld [vmem:[%s1] sm:$0x3]
  %v22 = vld [vmem:[%s2] sm:$0x1]
  %v24 = vperm.slane %v22, 0
  %vm26 = vcmask 31744
  %v28 = vsel %vm26, %v19, 0
  %v31 = vsel %vm26, %v20, 0
  %vm33 = vcmask 1041408
  %v35 = vsel %vm33, %v21, 0
  %37 = vmatpush.bf16.msra.mxu0 0
  %38 = vmatpush.bf16.msra.mxu0 0
  %39 = vmatpush.bf16.msra.mxu0 0
  %40 = vmatpush.bf16.msra.mxu0 0
  %41 = vmatpush.bf16.msra.mxu0 0
  %42 = vmatpush.bf16.msra.mxu0 0
  %43 = vmatpush.bf16.msra.mxu0 0
  %44 = vmatpush.bf16.msra.mxu0 %v35
  %45 = vmatmul.bf16.gmra.mxu0 %v28
  %v46 = vpop.f32.mrf.mxu0
  %v47 = vadd.f32 %v24, %v46
  %v48 = vpop.f32.mrf.mxu0
  %v49 = vadd.f32 %v24, %v48
  %50 = vmatmul.bf16.gmra.mxu0 %v31
  %v51 = vpop.f32.mrf.mxu0
  %v52 = vadd.f32 %v24, %v51
  %v53 = vpop.f32.mrf.mxu0
  %v54 = vadd.f32 %v24, %v53
  %55 = vdwg.mxu0
  %vm56 = vcmask 261120
  %57 = vst.msk [vmem:[%s3] sm:$0xff] %vm56, %v47
  %58 = vst.msk [vmem:[%s3 + $0x8] sm:$0xff] %vm56, %v49
  %59 = vst.msk [vmem:[%s3 + $0x10] sm:$0xff] %vm56, %v52
  %60 = vst.msk [vmem:[%s3 + $0x18] sm:$0xff] %vm56, %v54
  // Predicated region
  $region14: #{transformer_forward.8} parent=0 // pred_check
    _
  $region15: #{transformer_forward.8} parent=0 // pred_check_branch
    %62 = sbr.rel (0) target = $region17
  $region16: #{transformer_forward.8} parent=0 // pred_region
    _
  $region17: #{transformer_forward.8} parent=0 // pred_fallthru
    _
  // Predicated region
  $region18: #{transformer_forward.8} parent=0 // pred_check
    _
  $region19: #{transformer_forward.8} parent=0 // pred_check_branch
    %64 = sbr.rel (0) target = $region21
  $region20: #{transformer_forward.8} parent=0 // pred_region
    _
  $region21: #{transformer_forward.8} parent=0 // pred_fallthru
    _

// kernel: transformer_forward.10
$region0: #{transformer_forward.10}
  #allocation0 [shape = 'u32[]', space=smem, size = 0x4, offset = 0x4, fixed_abs, tag = 'smem constant byte address 0x4 - core index']
  #allocation1 [shape = 'u32[72,128]{1,0:T(1,128)}', space=vmem, size = 0x9000, scoped, tag = 'internal scratch']
  %s0 = inlined_call_operand.vmem [shape: bf16[32,96], index: 0, kind: input, shape index: {}]
  %s1 = inlined_call_operand.vmem [shape: f32[32,32], index: 1, kind: input, shape index: {}]
  %s2 = inlined_call_operand.vmem [shape: bf16[32,32], index: 2, kind: input, shape index: {}]
  %s3 = inlined_call_operand.vmem [shape: f32[1,32], index: 3, kind: input, shape index: {}]
  %s4 = inlined_call_operand.vmem [shape: f32[1,32], index: 4, kind: input, shape index: {}]
  %s5 = inlined_call_operand.vmem [shape: f32[1,32], index: 5, kind: input, shape index: {}]
  %s6 = inlined_call_operand.vmem [shape: f32[32,32], index: 6, kind: output, shape index: {}]
  %s7 = sld [smem:[#allocation0]]
  $region57: #{transformer_forward.10} parent=0
    _
  %s9 = ssub.s32 1, %s7
  %s10 = scalar_select 0, %s9, %s7
  loop: start=0, step=1, limit=4
  $region2: #{transformer_forward.10} parent=0 // loop_pre_header
    _
  $region3: #{transformer_forward.10} parent=0 // loop_header
    %s12 = sphi 0, %s16
    %p13 = scmp.ge.s32.totalorder %s12, 4
    %s22 = sphi 0, %s24
    %s25 = sphi 0, %s22
    %s26 = sphi 0, %s25
    %s42 = sphi 0, %s26
    %s48 = sphi 0, %s50
    %s51 = sphi 0, %s48
    %s52 = sphi 0, %s51
    %s68 = sphi 0, %s52
    %s72 = sphi 0, %s72
    %s74 = sphi 0, %s72
    %s75 = sphi 0, %s74
    %s89 = sphi 0, %s75
    %s93 = sphi 0, %s93
    %s95 = sphi 0, %s93
    %s96 = sphi 0, %s95
    %s110 = sphi 0, %s96
    %s114 = sphi 0, %s114
    %s116 = sphi 0, %s114
    %s117 = sphi 0, %s116
    %s131 = sphi 0, %s117
    %s135 = sphi 0, %s135
    %s137 = sphi 0, %s135
    %s138 = sphi 0, %s137
    %s152 = sphi 0, %s138
    %s158 = sphi 0, %s160
    %s161 = sphi 0, %s158
    %s162 = sphi 0, %s161
    %s178 = sphi 0, %s162
  $region4: #{transformer_forward.10} parent=0 // loop_header_branch
    %15 = sbr.rel (%p13) target = $region8
  $region5: #{transformer_forward.10} parent=0 // loop_body
    %s17 = ssub.s32 %s12, 1
    %s18 = ssub.s32 %s12, 2
    %s19 = sadd.s32 %s12, 1
    %s20 = ssub.s32 %s12, %s19
    %p21 = scmp.eq.s32.totalorder %s20, 0
    %s23 = sadd.s32 %s22, 1
    %s24 = scalar_select %p21, %s22, %s23
    %p27 = pneg %p21
    %p28 = scmp.eq.s32.totalorder %s12, 1
    %p29 = por %p27, %p28
    %p30 = scmp.ne.s32.totalorder %s22, %s25
    %p31 = scmp.eq.s32.totalorder %s12, 0
    %p32 = por %p30, %p31
    %p33 = scmp.ne.s32.totalorder %s22, %s25
    %p34 = scmp.eq.s32.totalorder %s17, 1
    %p35 = por %p33, %p34
    %p36 = scmp.ne.s32.totalorder %s25, %s26
    %p37 = scmp.eq.s32.totalorder %s17, 0
    %p38 = por %p36, %p37
    %p39 = scmp.ne.s32.totalorder %s25, %s26
    %p40 = scmp.eq.s32.totalorder %s18, 1
    %p41 = por %p39, %p40
    %p43 = scmp.ne.s32.totalorder %s26, %s42
    %p44 = scmp.eq.s32.totalorder %s18, 0
    %p45 = por %p43, %p44
    %s46 = ssub.s32 %s12, %s19
    %p47 = scmp.eq.s32.totalorder %s46, 0
    %s49 = sadd.s32 %s48, 1
    %s50 = scalar_select %p47, %s48, %s49
    %p53 = pneg %p47
    %p54 = scmp.eq.s32.totalorder %s12, 1
    %p55 = por %p53, %p54
    %p56 = scmp.ne.s32.totalorder %s48, %s51
    %p57 = scmp.eq.s32.totalorder %s12, 0
    %p58 = por %p56, %p57
    %p59 = scmp.ne.s32.totalorder %s48, %s51
    %p60 = scmp.eq.s32.totalorder %s17, 1
    %p61 = por %p59, %p60
    %p62 = scmp.ne.s32.totalorder %s51, %s52
    %p63 = scmp.eq.s32.totalorder %s17, 0
    %p64 = por %p62, %p63
    %p65 = scmp.ne.s32.totalorder %s51, %s52
    %p66 = scmp.eq.s32.totalorder %s18, 1
    %p67 = por %p65, %p66
    %p69 = scmp.ne.s32.totalorder %s52, %s68
    %p70 = scmp.eq.s32.totalorder %s18, 0
    %p71 = por %p69, %p70
    %s73 = sadd.s32 %s72, 1
    %p76 = scmp.eq.s32.totalorder %s12, 1
    %p77 = scmp.ne.s32.totalorder %s72, %s74
    %p78 = scmp.eq.s32.totalorder %s12, 0
    %p79 = por %p77, %p78
    %p80 = scmp.ne.s32.totalorder %s72, %s74
    %p81 = scmp.eq.s32.totalorder %s17, 1
    %p82 = por %p80, %p81
    %p83 = scmp.ne.s32.totalorder %s74, %s75
    %p84 = scmp.eq.s32.totalorder %s17, 0
    %p85 = por %p83, %p84
    %p86 = scmp.ne.s32.totalorder %s74, %s75
    %p87 = scmp.eq.s32.totalorder %s18, 1
    %p88 = por %p86, %p87
    %p90 = scmp.ne.s32.totalorder %s75, %s89
    %p91 = scmp.eq.s32.totalorder %s18, 0
    %p92 = por %p90, %p91
    %s94 = sadd.s32 %s93, 1
    %p97 = scmp.eq.s32.totalorder %s12, 1
    %p98 = scmp.ne.s32.totalorder %s93, %s95
    %p99 = scmp.eq.s32.totalorder %s12, 0
    %p100 = por %p98, %p99
    %p101 = scmp.ne.s32.totalorder %s93, %s95
    %p102 = scmp.eq.s32.totalorder %s17, 1
    %p103 = por %p101, %p102
    %p104 = scmp.ne.s32.totalorder %s95, %s96
    %p105 = scmp.eq.s32.totalorder %s17, 0
    %p106 = por %p104, %p105
    %p107 = scmp.ne.s32.totalorder %s95, %s96
    %p108 = scmp.eq.s32.totalorder %s18, 1
    %p109 = por %p107, %p108
    %p111 = scmp.ne.s32.totalorder %s96, %s110
    %p112 = scmp.eq.s32.totalorder %s18, 0
    %p113 = por %p111, %p112
    %s115 = sadd.s32 %s114, 1
    %p118 = scmp.eq.s32.totalorder %s12, 1
    %p119 = scmp.ne.s32.totalorder %s114, %s116
    %p120 = scmp.eq.s32.totalorder %s12, 0
    %p121 = por %p119, %p120
    %p122 = scmp.ne.s32.totalorder %s114, %s116
    %p123 = scmp.eq.s32.totalorder %s17, 1
    %p124 = por %p122, %p123
    %p125 = scmp.ne.s32.totalorder %s116, %s117
    %p126 = scmp.eq.s32.totalorder %s17, 0
    %p127 = por %p125, %p126
    %p128 = scmp.ne.s32.totalorder %s116, %s117
    %p129 = scmp.eq.s32.totalorder %s18, 1
    %p130 = por %p128, %p129
    %p132 = scmp.ne.s32.totalorder %s117, %s131
    %p133 = scmp.eq.s32.totalorder %s18, 0
    %p134 = por %p132, %p133
    %s136 = sadd.s32 %s135, 1
    %p139 = scmp.eq.s32.totalorder %s12, 1
    %p140 = scmp.ne.s32.totalorder %s135, %s137
    %p141 = scmp.eq.s32.totalorder %s12, 0
    %p142 = por %p140, %p141
    %p143 = scmp.ne.s32.totalorder %s135, %s137
    %p144 = scmp.eq.s32.totalorder %s17, 1
    %p145 = por %p143, %p144
    %p146 = scmp.ne.s32.totalorder %s137, %s138
    %p147 = scmp.eq.s32.totalorder %s17, 0
    %p148 = por %p146, %p147
    %p149 = scmp.ne.s32.totalorder %s137, %s138
    %p150 = scmp.eq.s32.totalorder %s18, 1
    %p151 = por %p149, %p150
    %p153 = scmp.ne.s32.totalorder %s138, %s152
    %p154 = scmp.eq.s32.totalorder %s18, 0
    %p155 = por %p153, %p154
    %s156 = ssub.s32 %s12, %s19
    %p157 = scmp.eq.s32.totalorder %s156, 0
    %s159 = sadd.s32 %s158, 1
    %s160 = scalar_select %p157, %s158, %s159
    %p163 = pneg %p157
    %p164 = scmp.eq.s32.totalorder %s12, 1
    %p165 = por %p163, %p164
    %p166 = scmp.ne.s32.totalorder %s158, %s161
    %p167 = scmp.eq.s32.totalorder %s12, 0
    %p168 = por %p166, %p167
    %p169 = scmp.ne.s32.totalorder %s158, %s161
    %p170 = scmp.eq.s32.totalorder %s17, 1
    %p171 = por %p169, %p170
    %p172 = scmp.ne.s32.totalorder %s161, %s162
    %p173 = scmp.eq.s32.totalorder %s17, 0
    %p174 = por %p172, %p173
    %p175 = scmp.ne.s32.totalorder %s161, %s162
    %p176 = scmp.eq.s32.totalorder %s18, 1
    %p177 = por %p175, %p176
    %p179 = scmp.ne.s32.totalorder %s162, %s178
    %p180 = scmp.eq.s32.totalorder %s18, 0
    %p181 = por %p179, %p180
    %p182 = scmp.le.s32.totalorder 1, %s12
    %p183 = scmp.lt.s32.totalorder %s12, 3
    %p184 = pnand %p182, %p183
    %p185 = pneg %p184
    // Predicated region
    $region9: #{transformer_forward.10} parent=5 // pred_check
      _
    $region10: #{transformer_forward.10} parent=5 // pred_check_branch
      %187 = sbr.rel (%p184) target = $region12
    $region11: #{transformer_forward.10} parent=5 // pred_region
      %s188 = ssub.s32 %s12, 1
      // Predicated region
      $region13: #{transformer_forward.10} parent=11 // pred_check
        %p189 = pneg %p85
      $region14: #{transformer_forward.10} parent=11 // pred_check_branch
        %191 = sbr.rel (%p189) target = $region16
      $region15: #{transformer_forward.10} parent=11 // pred_region
        _
      $region16: #{transformer_forward.10} parent=11 // pred_fallthru
        _
      // Predicated region
      $region17: #{transformer_forward.10} parent=11 // pred_check
        %p192 = pneg %p106
      $region18: #{transformer_forward.10} parent=11 // pred_check_branch
        %194 = sbr.rel (%p192) target = $region20
      $region19: #{transformer_forward.10} parent=11 // pred_region
        _
      $region20: #{transformer_forward.10} parent=11 // pred_fallthru
        _
      // Predicated region
      $region21: #{transformer_forward.10} parent=11 // pred_check
        %p195 = pneg %p127
      $region22: #{transformer_forward.10} parent=11 // pred_check_branch
        %197 = sbr.rel (%p195) target = $region24
      $region23: #{transformer_forward.10} parent=11 // pred_region
        _
      $region24: #{transformer_forward.10} parent=11 // pred_fallthru
        _
      // Predicated region
      $region25: #{transformer_forward.10} parent=11 // pred_check
        %p198 = pneg %p148
      $region26: #{transformer_forward.10} parent=11 // pred_check_branch
        %200 = sbr.rel (%p198) target = $region28
      $region27: #{transformer_forward.10} parent=11 // pred_region
        _
      $region28: #{transformer_forward.10} parent=11 // pred_fallthru
        _
    $region12: #{transformer_forward.10} parent=5 // pred_fallthru
      _
    %p201 = scmp.lt.s32.totalorder %s12, 2
    // Predicated region
    $region29: #{transformer_forward.10} parent=5 // pred_check
      %p202 = pneg %p201
    $region30: #{transformer_forward.10} parent=5 // pred_check_branch
      %204 = sbr.rel (%p202) target = $region32
    $region31: #{transformer_forward.10} parent=5 // pred_region
      // Predicated region
      $region33: #{transformer_forward.10} parent=31 // pred_check
        %p205 = pneg %p32
      $region34: #{transformer_forward.10} parent=31 // pred_check_branch
        %207 = sbr.rel (%p205) target = $region36
      $region35: #{transformer_forward.10} parent=31 // pred_region
        %s208 = smul.u32 2, %s12
        %p209 = scmp.lt.s32.totalorder %s208, 3
        %s210 = scalar_select %p209, %s208, 3
        %s211 = smul.addr %s210, 4
        %s212 = scalar_lea.vmem %s0, %s211
        %s213 = smul.u32 2, %s12
      $region36: #{transformer_forward.10} parent=31 // pred_fallthru
        _
      // Predicated region
      $region37: #{transformer_forward.10} parent=31 // pred_check
        %p214 = pneg %p58
      $region38: #{transformer_forward.10} parent=31 // pred_check_branch
        %216 = sbr.rel (%p214) target = $region40
      $region39: #{transformer_forward.10} parent=31 // pred_region
        %s217 = smul.u32 2, %s12
        %p218 = scmp.lt.s32.totalorder %s217, 3
        %s219 = scalar_select %p218, %s217, 3
        %s220 = smul.addr %s219, 8
        %s221 = scalar_lea.vmem %s1, %s220
        %s222 = smul.u32 2, %s12
      $region40: #{transformer_forward.10} parent=31 // pred_fallthru
        _
    $region32: #{transformer_forward.10} parent=5 // pred_fallthru
      _
    %p223 = scmp.le.s32.totalorder 1, %s12
    %p224 = scmp.lt.s32.totalorder %s12, 3
    %p225 = pnand %p223, %p224
    %p226 = pneg %p225
    // Predicated region
    $region41: #{transformer_forward.10} parent=5 // pred_check
      _
    $region42: #{transformer_forward.10} parent=5 // pred_check_branch
      %228 = sbr.rel (%p225) target = $region44
    $region43: #{transformer_forward.10} parent=5 // pred_region
      %s229 = ssub.s32 %s12, 1
      %s230 = smul.u32 2, %s17
      %p231 = scmp.lt.s32.totalorder %s230, 3
      %s232 = scalar_select %p231, %s230, 3
      %s233 = smul.addr %s232, 4
      %s234 = scalar_lea.vmem %s0, %s233
      %p235 = pneg %p38
      %p236 = pneg %p35
      %s237 = smul.u32 2, %s17
      %p238 = scmp.lt.s32.totalorder %s237, 3
      %s239 = scalar_select %p238, %s237, 3
      %s240 = smul.addr %s239, 8
      %s241 = scalar_lea.vmem %s1, %s240
      %p242 = pneg %p64
      %p243 = pneg %p61
      %p244 = pneg %p85
      %p245 = pneg %p82
      %p246 = pneg %p106
      %p247 = pneg %p103
      %p248 = pneg %p127
      %p249 = pneg %p124
      %p250 = pneg %p148
      %p251 = pneg %p145
      %p252 = pneg %p174
      %p253 = pneg %p171
      %s254 = smul.u32 2, %s17
      %p255 = scmp.lt.s32.totalorder %s254, 3
      %s256 = scalar_select %p255, %s254, 3
      %s257 = smul.addr %s256, 8
      %s258 = scalar_lea.vmem %s6, %s257
      %s259 = smul.u32 2, %s17
      %p260 = scmp.lt.s32.totalorder %s259, 3
      %s261 = scalar_select %p260, %s259, 3
      %s262 = smul.addr %s261, 4
      %s263 = scalar_lea.vmem %s0, %s262
      %s264 = smul.u32 2, %s17
      %s265 = smul.u32 2, %s17
      %p266 = scmp.lt.s32.totalorder %s265, 3
      %s267 = scalar_select %p266, %s265, 3
      %s268 = smul.addr %s267, 8
      %s269 = scalar_lea.vmem %s1, %s268
      %s270 = smul.u32 2, %s17
      %s271 = smul.u32 2, %s17
      %p272 = scmp.lt.s32.totalorder %s271, 3
      %s273 = scalar_select %p272, %s271, 3
      %s274 = smul.addr %s273, 8
      %s275 = scalar_lea.vmem %s6, %s274
      %s276 = smul.u32 2, %s17
      %v278 = vld [vmem:[%s263] sm:$0xf]
      %v279 = vld [vmem:[%s263 + $0x4] sm:$0xf]
      %v280 = vunpack.c.l.bf16 %v278
      %v281 = vunpack.c.l.bf16 %v279
      %284 = vrot.lane.b32.xlu0 %v280, 96
      %v285 = vpop.permute.xlu0 %284
      %286 = vrot.lane.b32.xlu0 %v281, 96
      %v287 = vpop.permute.xlu0 %286
      %vm288 = vcmask 64512
      %v289 = vsel %vm288, %v280, 0
      %v291 = vsel %vm288, %v281, 0
      %v293 = vsel %vm288, %v285, 0
      %v295 = vsel %vm288, %v287, 0
      %297 = vmatpush.xpose.msra.mxu0 0.0
      %298 = vmatpush.xpose.msra.mxu0 0.0
      %299 = vmatpush.xpose.msra.mxu0 0.0
      %300 = vmatpush.xpose.msra.mxu0 0.0
      %301 = vmatpush.xpose.msra.mxu0 0.0
      %302 = vmatpush.xpose.msra.mxu0 0.0
      %303 = vmatpush.xpose.msra.mxu0 0.0
      %304 = vmatpush.xpose.msra.mxu0 0.0
      %305 = vmatpush.xpose.msra.mxu0 0.0
      %306 = vmatpush.xpose.msra.mxu0 0.0
      %307 = vmatpush.xpose.msra.mxu0 0.0
      %308 = vmatpush.xpose.msra.mxu0 0.0
      %309 = vmatpush.xpose.msra.mxu0 0.0
      %310 = vmatpush.xpose.msra.mxu0 0.0
      %311 = vmatpush.xpose.msra.mxu0 %v295
      %312 = vmatpush.xpose.msra.mxu0 %v293
      %313 = vmatmul.f32.gmra.mxu0 %v289
      %v314 = vpop.f32.mrf.mxu0
      %v315 = vadd.f32 0.0, %v314
      %316 = vmatmul.f32.gmra.mxu0 %v291
      %v317 = vpop.f32.mrf.mxu0
      %v318 = vadd.f32 0.0, %v317
      %319 = vdwg.mxu0
      %v320 = vmul.f32 %v315, 0.35355338
      %v321 = vmul.f32 %v318, 0.35355338
      %v322 = vlaneseq
      %v323 = vand.u32 %v322, 127
      %vm324 = vcmp.lt.s32.totalorder %v323, 8
      %v325 = vsel %vm324, %v320, -1e+30
      %v326 = vsel %vm324, %v321, -1e+30
      %vm327 = vcmask 130048
      %v328 = vsel %vm327, %v325, -inf
      %329 = vmax.xlane.f32.xlu0 %v328
      %v330 = vpop.xlane.xlu0 %329
      %v331 = vsel %vm327, %v326, -inf
      %332 = vmax.xlane.f32.xlu0 %v331
      %v333 = vpop.xlane.xlu0 %332
      %v334 = vsub.f32 %v325, %v330
      %v335 = vsub.f32 %v326, %v333
      %v336 = vmul.f32 %v334, 1.442695
      %v337 = vpow.pop %v336
      %v338 = vmul.f32 %v335, 1.442695
      %v339 = vpow.pop %v338
      %v340 = vsel %vm327, %v337, 0.0
      %341 = vadd.xlane.f32.xlu0 %v340
      %v342 = vpop.xlane.xlu0 %341
      %v343 = vsel %vm327, %v339, 0.0
      %344 = vadd.xlane.f32.xlu0 %v343
      %v345 = vpop.xlane.xlu0 %344
      %v346 = vpack.c.bf16 %v339, %v337
      %v349 = vunpack.c.l.b16 %v278
      %v350 = vunpack.c.l.b16 %v279
      %v351 = vpack.c.b16 %v350, %v349
      %352 = vrot.lane.b32.xlu0 %v351, 64
      %v353 = vpop.permute.xlu0 %352
      %v356 = vsel %vm327, %v346, 0
      %358 = vmatpush.bf16.msra.mxu0 0
      %359 = vmatpush.bf16.msra.mxu0 0
      %360 = vmatpush.bf16.msra.mxu0 0
      %361 = vmatpush.bf16.msra.mxu0 0
      %362 = vmatpush.bf16.msra.mxu0 0
      %363 = vmatpush.bf16.msra.mxu0 0
      %364 = vmatpush.bf16.msra.mxu0 0
      %365 = vmatpush.bf16.msra.mxu0 %v353
      %366 = vmatmul.bf16.gmra.mxu0 %v356
      %v367 = vpop.f32.mrf.mxu0
      %v368 = vadd.f32 0.0, %v367
      %v369 = vpop.f32.mrf.mxu0
      %v370 = vadd.f32 0.0, %v369
      %371 = vdwg.mxu0
      %v372 = vrcp.pop %v342
      %v373 = vrcp.pop %v345
      %v374 = vmul.f32 %v368, %v372
      %v375 = vmul.f32 %v370, %v373
      %376 = vrot.lane.b32.xlu0 %v280, 120
      %v377 = vpop.permute.xlu0 %376
      %378 = vrot.lane.b32.xlu0 %v281, 120
      %v379 = vpop.permute.xlu0 %378
      %380 = vrot.lane.b32.xlu0 %v280, 88
      %v381 = vpop.permute.xlu0 %380
      %382 = vrot.lane.b32.xlu0 %v281, 88
      %v383 = vpop.permute.xlu0 %382
      %v384 = vsel %vm288, %v377, 0
      %v386 = vsel %vm288, %v379, 0
      %v388 = vsel %vm288, %v381, 0
      %v390 = vsel %vm288, %v383, 0
      %392 = vmatpush.xpose.msra.mxu0 0.0
      %393 = vmatpush.xpose.msra.mxu0 0.0
      %394 = vmatpush.xpose.msra.mxu0 0.0
      %395 = vmatpush.xpose.msra.mxu0 0.0
      %396 = vmatpush.xpose.msra.mxu0 0.0
      %397 = vmatpush.xpose.msra.mxu0 0.0
      %398 = vmatpush.xpose.msra.mxu0 0.0
      %399 = vmatpush.xpose.msra.mxu0 0.0
      %400 = vmatpush.xpose.msra.mxu0 0.0
      %401 = vmatpush.xpose.msra.mxu0 0.0
      %402 = vmatpush.xpose.msra.mxu0 0.0
      %403 = vmatpush.xpose.msra.mxu0 0.0
      %404 = vmatpush.xpose.msra.mxu0 0.0
      %405 = vmatpush.xpose.msra.mxu0 0.0
      %406 = vmatpush.xpose.msra.mxu0 %v390
      %407 = vmatpush.xpose.msra.mxu0 %v388
      %408 = vmatmul.f32.gmra.mxu0 %v384
      %v409 = vpop.f32.mrf.mxu0
      %v410 = vadd.f32 0.0, %v409
      %411 = vmatmul.f32.gmra.mxu0 %v386
      %v412 = vpop.f32.mrf.mxu0
      %v413 = vadd.f32 0.0, %v412
      %414 = vdwg.mxu0
      %v415 = vmul.f32 %v410, 0.35355338
      %v416 = vmul.f32 %v413, 0.35355338
      %v417 = vsel %vm324, %v415, -1e+30
      %v418 = vsel %vm324, %v416, -1e+30
      %v419 = vsel %vm327, %v417, -inf
      %420 = vmax.xlane.f32.xlu0 %v419
      %v421 = vpop.xlane.xlu0 %420
      %v422 = vsel %vm327, %v418, -inf
      %423 = vmax.xlane.f32.xlu0 %v422
      %v424 = vpop.xlane.xlu0 %423
      %v425 = vsub.f32 %v417, %v421
      %v426 = vsub.f32 %v418, %v424
      %v427 = vmul.f32 %v425, 1.442695
      %v428 = vpow.pop %v427
      %v429 = vmul.f32 %v426, 1.442695
      %v430 = vpow.pop %v429
      %v431 = vsel %vm327, %v428, 0.0
      %432 = vadd.xlane.f32.xlu0 %v431
      %v433 = vpop.xlane.xlu0 %432
      %v434 = vsel %vm327, %v430, 0.0
      %435 = vadd.xlane.f32.xlu0 %v434
      %v436 = vpop.xlane.xlu0 %435
      %v437 = vpack.c.bf16 %v430, %v428
      %438 = vrot.lane.b32.xlu0 %v351, 56
      %v439 = vpop.permute.xlu0 %438
      %v442 = vsel %vm327, %v437, 0
      %444 = vmatpush.bf16.msra.mxu0 0
      %445 = vmatpush.bf16.msra.mxu0 0
      %446 = vmatpush.bf16.msra.mxu0 0
      %447 = vmatpush.bf16.msra.mxu0 0
      %448 = vmatpush.bf16.msra.mxu0 0
      %449 = vmatpush.bf16.msra.mxu0 0
      %450 = vmatpush.bf16.msra.mxu0 0
      %451 = vmatpush.bf16.msra.mxu0 %v439
      %452 = vmatmul.bf16.gmra.mxu0 %v442
      %v453 = vpop.f32.mrf.mxu0
      %v454 = vadd.f32 0.0, %v453
      %v455 = vpop.f32.mrf.mxu0
      %v456 = vadd.f32 0.0, %v455
      %457 = vdwg.mxu0
      %v458 = vrcp.pop %v433
      %v459 = vrcp.pop %v436
      %v460 = vmul.f32 %v454, %v458
      %v461 = vmul.f32 %v456, %v459
      %462 = vrot.lane.b32.xlu0 %v280, 112
      %v463 = vpop.permute.xlu0 %462
      %464 = vrot.lane.b32.xlu0 %v281, 112
      %v465 = vpop.permute.xlu0 %464
      %466 = vrot.lane.b32.xlu0 %v280, 80
      %v467 = vpop.permute.xlu0 %466
      %468 = vrot.lane.b32.xlu0 %v281, 80
      %v469 = vpop.permute.xlu0 %468
      %v470 = vsel %vm288, %v463, 0
      %v472 = vsel %vm288, %v465, 0
      %v474 = vsel %vm288, %v467, 0
      %v476 = vsel %vm288, %v469, 0
      %478 = vmatpush.xpose.msra.mxu0 0.0
      %479 = vmatpush.xpose.msra.mxu0 0.0
      %480 = vmatpush.xpose.msra.mxu0 0.0
      %481 = vmatpush.xpose.msra.mxu0 0.0
      %482 = vmatpush.xpose.msra.mxu0 0.0
      %483 = vmatpush.xpose.msra.mxu0 0.0
      %484 = vmatpush.xpose.msra.mxu0 0.0
      %485 = vmatpush.xpose.msra.mxu0 0.0
      %486 = vmatpush.xpose.msra.mxu0 0.0
      %487 = vmatpush.xpose.msra.mxu0 0.0
      %488 = vmatpush.xpose.msra.mxu0 0.0
      %489 = vmatpush.xpose.msra.mxu0 0.0
      %490 = vmatpush.xpose.msra.mxu0 0.0
      %491 = vmatpush.xpose.msra.mxu0 0.0
      %492 = vmatpush.xpose.msra.mxu0 %v476
      %493 = vmatpush.xpose.msra.mxu0 %v474
      %494 = vmatmul.f32.gmra.mxu0 %v470
      %v495 = vpop.f32.mrf.mxu0
      %v496 = vadd.f32 0.0, %v495
      %497 = vmatmul.f32.gmra.mxu0 %v472
      %v498 = vpop.f32.mrf.mxu0
      %v499 = vadd.f32 0.0, %v498
      %500 = vdwg.mxu0
      %v501 = vmul.f32 %v496, 0.35355338
      %v502 = vmul.f32 %v499, 0.35355338
      %v503 = vsel %vm324, %v501, -1e+30
      %v504 = vsel %vm324, %v502, -1e+30
      %v505 = vsel %vm327, %v503, -inf
      %506 = vmax.xlane.f32.xlu0 %v505
      %v507 = vpop.xlane.xlu0 %506
      %v508 = vsel %vm327, %v504, -inf
      %509 = vmax.xlane.f32.xlu0 %v508
      %v510 = vpop.xlane.xlu0 %509
      %v511 = vsub.f32 %v503, %v507
      %v512 = vsub.f32 %v504, %v510
      %v513 = vmul.f32 %v511, 1.442695
      %v514 = vpow.pop %v513
      %v515 = vmul.f32 %v512, 1.442695
      %v516 = vpow.pop %v515
      %v517 = vsel %vm327, %v514, 0.0
      %518 = vadd.xlane.f32.xlu0 %v517
      %v519 = vpop.xlane.xlu0 %518
      %v520 = vsel %vm327, %v516, 0.0
      %521 = vadd.xlane.f32.xlu0 %v520
      %v522 = vpop.xlane.xlu0 %521
      %v523 = vpack.c.bf16 %v516, %v514
      %524 = vrot.lane.b32.xlu0 %v351, 48
      %v525 = vpop.permute.xlu0 %524
      %v528 = vsel %vm327, %v523, 0
      %530 = vmatpush.bf16.msra.mxu0 0
      %531 = vmatpush.bf16.msra.mxu0 0
      %532 = vmatpush.bf16.msra.mxu0 0
      %533 = vmatpush.bf16.msra.mxu0 0
      %534 = vmatpush.bf16.msra.mxu0 0
      %535 = vmatpush.bf16.msra.mxu0 0
      %536 = vmatpush.bf16.msra.mxu0 0
      %537 = vmatpush.bf16.msra.mxu0 %v525
      %538 = vmatmul.bf16.gmra.mxu0 %v528
      %v539 = vpop.f32.mrf.mxu0
      %v540 = vadd.f32 0.0, %v539
      %v541 = vpop.f32.mrf.mxu0
      %v542 = vadd.f32 0.0, %v541
      %543 = vdwg.mxu0
      %v544 = vrcp.pop %v519
      %v545 = vrcp.pop %v522
      %v546 = vmul.f32 %v540, %v544
      %v547 = vmul.f32 %v542, %v545
      %548 = vrot.lane.b32.xlu0 %v280, 104
      %v549 = vpop.permute.xlu0 %548
      %550 = vrot.lane.b32.xlu0 %v281, 104
      %v551 = vpop.permute.xlu0 %550
      %552 = vrot.lane.b32.xlu0 %v280, 72
      %v553 = vpop.permute.xlu0 %552
      %554 = vrot.lane.b32.xlu0 %v281, 72
      %v555 = vpop.permute.xlu0 %554
      %v556 = vsel %vm288, %v549, 0
      %v558 = vsel %vm288, %v551, 0
      %v560 = vsel %vm288, %v553, 0
      %v562 = vsel %vm288, %v555, 0
      %564 = vmatpush.xpose.msra.mxu0 0.0
      %565 = vmatpush.xpose.msra.mxu0 0.0
      %566 = vmatpush.xpose.msra.mxu0 0.0
      %567 = vmatpush.xpose.msra.mxu0 0.0
      %568 = vmatpush.xpose.msra.mxu0 0.0
      %569 = vmatpush.xpose.msra.mxu0 0.0
      %570 = vmatpush.xpose.msra.mxu0 0.0
      %571 = vmatpush.xpose.msra.mxu0 0.0
      %572 = vmatpush.xpose.msra.mxu0 0.0
      %573 = vmatpush.xpose.msra.mxu0 0.0
      %574 = vmatpush.xpose.msra.mxu0 0.0
      %575 = vmatpush.xpose.msra.mxu0 0.0
      %576 = vmatpush.xpose.msra.mxu0 0.0
      %577 = vmatpush.xpose.msra.mxu0 0.0
      %578 = vmatpush.xpose.msra.mxu0 %v562
      %579 = vmatpush.xpose.msra.mxu0 %v560
      %580 = vmatmul.f32.gmra.mxu0 %v556
      %v581 = vpop.f32.mrf.mxu0
      %v582 = vadd.f32 0.0, %v581
      %583 = vmatmul.f32.gmra.mxu0 %v558
      %v584 = vpop.f32.mrf.mxu0
      %v585 = vadd.f32 0.0, %v584
      %586 = vdwg.mxu0
      %v587 = vmul.f32 %v582, 0.35355338
      %v588 = vmul.f32 %v585, 0.35355338
      %v589 = vsel %vm324, %v587, -1e+30
      %v590 = vsel %vm324, %v588, -1e+30
      %v591 = vsel %vm327, %v589, -inf
      %592 = vmax.xlane.f32.xlu0 %v591
      %v593 = vpop.xlane.xlu0 %592
      %v594 = vsel %vm327, %v590, -inf
      %595 = vmax.xlane.f32.xlu0 %v594
      %v596 = vpop.xlane.xlu0 %595
      %v597 = vsub.f32 %v589, %v593
      %v598 = vsub.f32 %v590, %v596
      %v599 = vmul.f32 %v597, 1.442695
      %v600 = vpow.pop %v599
      %v601 = vmul.f32 %v598, 1.442695
      %v602 = vpow.pop %v601
      %v603 = vsel %vm327, %v600, 0.0
      %604 = vadd.xlane.f32.xlu0 %v603
      %v605 = vpop.xlane.xlu0 %604
      %v606 = vsel %vm327, %v602, 0.0
      %607 = vadd.xlane.f32.xlu0 %v606
      %v608 = vpop.xlane.xlu0 %607
      %v609 = vpack.c.bf16 %v602, %v600
      %610 = vrot.lane.b32.xlu0 %v351, 40
      %v611 = vpop.permute.xlu0 %610
      %v614 = vsel %vm327, %v609, 0
      %616 = vmatpush.bf16.msra.mxu0 0
      %617 = vmatpush.bf16.msra.mxu0 0
      %618 = vmatpush.bf16.msra.mxu0 0
      %619 = vmatpush.bf16.msra.mxu0 0
      %620 = vmatpush.bf16.msra.mxu0 0
      %621 = vmatpush.bf16.msra.mxu0 0
      %622 = vmatpush.bf16.msra.mxu0 0
      %623 = vmatpush.bf16.msra.mxu0 %v611
      %624 = vmatmul.bf16.gmra.mxu0 %v614
      %v625 = vpop.f32.mrf.mxu0
      %v626 = vadd.f32 0.0, %v625
      %v627 = vpop.f32.mrf.mxu0
      %v628 = vadd.f32 0.0, %v627
      %629 = vdwg.mxu0
      %v630 = vrcp.pop %v605
      %v631 = vrcp.pop %v608
      %v632 = vmul.f32 %v626, %v630
      %v633 = vmul.f32 %v628, %v631
      %636 = vrot.lane.b32.xlu0 %v460, 8
      %v637 = vpop.permute.xlu0 %636
      %638 = vrot.lane.b32.xlu0 %v461, 8
      %v639 = vpop.permute.xlu0 %638
      %644 = vrot.lane.b32.xlu0 %v546, 16
      %v645 = vpop.permute.xlu0 %644
      %646 = vrot.lane.b32.xlu0 %v547, 16
      %v647 = vpop.permute.xlu0 %646
      %652 = vrot.lane.b32.xlu0 %v632, 24
      %v653 = vpop.permute.xlu0 %652
      %654 = vrot.lane.b32.xlu0 %v633, 24
      %v655 = vpop.permute.xlu0 %654
      %v658 = vsel %vm288, %v374, %v637
      %v659 = vsel %vm288, %v375, %v639
      %v660 = vsel %vm327, %v658, %v645
      %v661 = vsel %vm327, %v659, %v647
      %vm662 = vcmask 195584
      %v663 = vsel %vm662, %v660, %v653
      %v664 = vsel %vm662, %v661, %v655
      %v665 = vpack.c.bf16 %v664, %v663
      %v666 = vld [vmem:[%s2] sm:$0xf]
      %v667 = vld [vmem:[%s2 + $0x4] sm:$0xf]
      %v668 = vld [vmem:[%s2 + $0x8] sm:$0xf]
      %v669 = vld [vmem:[%s2 + $0xc] sm:$0xf]
      %v670 = vld [vmem:[%s3] sm:$0x1]
      %v672 = vperm.slane %v670, 0
      %v678 = vunpack.c.l.b16 %v666
      %v679 = vunpack.c.l.b16 %v667
      %v680 = vunpack.c.l.b16 %v668
      %v681 = vunpack.c.l.b16 %v669
      %v682 = vpack.c.b16 %v679, %v678
      %v683 = vpack.c.b16 %v681, %v680
      %vm686 = vcmask 261120
      %v688 = vsel %vm686, %v665, 0
      %690 = vmatpush.bf16.msra.mxu0 0
      %691 = vmatpush.bf16.msra.mxu0 0
      %692 = vmatpush.bf16.msra.mxu0 0
      %693 = vmatpush.bf16.msra.mxu0 0
      %694 = vmatpush.bf16.msra.mxu0 0
      %695 = vmatpush.bf16.msra.mxu0 0
      %696 = vmatpush.bf16.msra.mxu0 %v683
      %697 = vmatpush.bf16.msra.mxu0 %v682
      %698 = vmatmul.bf16.gmra.mxu0 %v688
      %v699 = vpop.f32.mrf.mxu0
      %v700 = vadd.f32 %v672, %v699
      %v701 = vpop.f32.mrf.mxu0
      %v702 = vadd.f32 %v672, %v701
      %703 = vdwg.mxu0
      %v704 = vld [vmem:[%s269] sm:$0xff]
      %v705 = vld [vmem:[%s269 + $0x8] sm:$0xff]
      %v706 = vadd.f32 %v700, %v704
      %v707 = vadd.f32 %v702, %v705
      %v708 = vld [vmem:[%s4] sm:$0x1]
      %v709 = vld [vmem:[%s5] sm:$0x1]
      %v710 = vsel %vm686, %v706, 0.0
      %711 = vadd.xlane.f32.xlu0 %v710
      %v712 = vpop.xlane.xlu0 %711
      %v713 = vsel %vm686, %v707, 0.0
      %714 = vadd.xlane.f32.xlu0 %v713
      %v715 = vpop.xlane.xlu0 %714
      %v716 = vrcp.pop 32.0
      %v717 = vmul.f32 32.0, %v716
      %v718 = vsub.f32 1.0, %v717
      %v719 = vmul.f32 %v716, %v718
      %v720 = vadd.f32 %v716, %v719
      %vm721 = vweird.f32 %v716
      %v722 = vsel %vm721, %v716, %v720
      %v723 = vmul.f32 %v712, %v722
      %v724 = vmul.f32 %v715, %v722
      %v725 = vsub.f32 %v706, %v723
      %v726 = vsub.f32 %v707, %v724
      %v727 = vmul.f32 %v725, %v725
      %v728 = vmul.f32 %v726, %v726
      %v729 = vsel %vm686, %v727, 0.0
      %730 = vadd.xlane.f32.xlu0 %v729
      %v731 = vpop.xlane.xlu0 %730
      %v732 = vsel %vm686, %v728, 0.0
      %733 = vadd.xlane.f32.xlu0 %v732
      %v734 = vpop.xlane.xlu0 %733
      %v735 = vmul.f32 %v731, %v722
      %v736 = vmul.f32 %v734, %v722
      %v737 = vadd.f32 %v735, 1e-05
      %v738 = vadd.f32 %v736, 1e-05
      %v739 = vrsqrt.pop %v737
      %v740 = vmul.f32 %v739, %v737
      %v741 = vmul.f32 %v740, %v739
      %v742 = vmul.f32 0.5, %v741
      %v743 = vsub.f32 1.5, %v742
      %v744 = vmul.f32 %v739, %v743
      %vm745 = vweird.f32 %v737
      %vm746 = vweird.f32 %v739
      %vm747 = vmor %vm745, %vm746
      %v748 = vsel %vm747, %v739, %v744
      %v749 = vrsqrt.pop %v738
      %v750 = vmul.f32 %v749, %v738
      %v751 = vmul.f32 %v750, %v749
      %v752 = vmul.f32 0.5, %v751
      %v753 = vsub.f32 1.5, %v752
      %v754 = vmul.f32 %v749, %v753
      %vm755 = vweird.f32 %v738
      %vm756 = vweird.f32 %v749
      %vm757 = vmor %vm755, %vm756
      %v758 = vsel %vm757, %v749, %v754
      %v759 = vmul.f32 %v725, %v748
      %v760 = vmul.f32 %v726, %v758
      %v762 = vperm.slane %v708, 0
      %v764 = vmul.f32 %v759, %v762
      %v765 = vmul.f32 %v760, %v762
      %v767 = vperm.slane %v709, 0
      %v769 = vadd.f32 %v764, %v767
      %v770 = vadd.f32 %v765, %v767
      %771 = vst.msk [vmem:[%s275] sm:$0xff] %vm686, %v769
      %772 = vst.msk [vmem:[%s275 + $0x8] sm:$0xff] %vm686, %v770
      %s773 = smul.u32 2, %s17
      %p774 = scmp.lt.s32.totalorder %s773, 3
      %s775 = scalar_select %p774, %s773, 3
      %s776 = smul.addr %s775, 8
      %s777 = scalar_lea.vmem %s6, %s776
      // Predicated region
      $region45: #{transformer_forward.10} parent=43 // pred_check
        %p778 = pneg %p171
      $region46: #{transformer_forward.10} parent=43 // pred_check_branch
        %780 = sbr.rel (%p778) target = $region48
      $region47: #{transformer_forward.10} parent=43 // pred_region
        %s781 = smul.u32 2, %s17
      $region48: #{transformer_forward.10} parent=43 // pred_fallthru
        _
    $region44: #{transformer_forward.10} parent=5 // pred_fallthru
      _
    %p782 = scmp.le.s32.totalorder 2, %s12
    // Predicated region
    $region49: #{transformer_forward.10} parent=5 // pred_check
      %p783 = pneg %p782
    $region50: #{transformer_forward.10} parent=5 // pred_check_branch
      %785 = sbr.rel (%p783) target = $region52
    $region51: #{transformer_forward.10} parent=5 // pred_region
      %s786 = ssub.s32 %s12, 2
      // Predicated region
      $region53: #{transformer_forward.10} parent=51 // pred_check
        %p787 = pneg %p177
      $region54: #{transformer_forward.10} parent=51 // pred_check_branch
        %789 = sbr.rel (%p787) target = $region56
      $region55: #{transformer_forward.10} parent=51 // pred_region
        %s790 = smul.u32 2, %s18
        %p791 = scmp.lt.s32.totalorder %s790, 3
        %s792 = scalar_select %p791, %s790, 3
        %s793 = smul.addr %s792, 8
        %s794 = scalar_lea.vmem %s6, %s793
      $region56: #{transformer_forward.10} parent=51 // pred_fallthru
        _
    $region52: #{transformer_forward.10} parent=5 // pred_fallthru
      _
  $region6: #{transformer_forward.10} parent=0 // loop_footer
    %s16 = sadd.s32 1, %s12
  $region7: #{transformer_forward.10} parent=0 // loop_footer_branch
    %11 = sbr.rel target = $region3
  $region8: #{transformer_forward.10} parent=0 // loop_exit
    _

// kernel: transformer_forward.11
$region0: #{transformer_forward.11}
  #allocation0 [shape = 'u32[]', space=smem, size = 0x4, offset = 0x4, fixed_abs, tag = 'smem constant byte address 0x4 - core index']
  #allocation1 [shape = 'u32[72,128]{1,0:T(1,128)}', space=vmem, size = 0x9000, scoped, tag = 'internal scratch']
  %s0 = inlined_call_operand.vmem [shape: f32[32,32], index: 0, kind: input, shape index: {}]
  %s1 = inlined_call_operand.vmem [shape: bf16[32,128], index: 1, kind: input, shape index: {}]
  %s2 = inlined_call_operand.vmem [shape: f32[1,128], index: 2, kind: input, shape index: {}]
  %s3 = inlined_call_operand.vmem [shape: bf16[128,32], index: 3, kind: input, shape index: {}]
  %s4 = inlined_call_operand.vmem [shape: f32[1,32], index: 4, kind: input, shape index: {}]
  %s5 = inlined_call_operand.vmem [shape: f32[1,32], index: 5, kind: input, shape index: {}]
  %s6 = inlined_call_operand.vmem [shape: f32[1,32], index: 6, kind: input, shape index: {}]
  %s7 = inlined_call_operand.vmem [shape: f32[32,32], index: 7, kind: output, shape index: {}]
  %s8 = sld [smem:[#allocation0]]
  $region38: #{transformer_forward.11} parent=0
    _
  %s10 = ssub.s32 1, %s8
  %s11 = scalar_select 0, %s10, %s8
  // Predicated region
  $region2: #{transformer_forward.11} parent=0 // pred_check
    _
  $region3: #{transformer_forward.11} parent=0 // pred_check_branch
    %13 = sbr.rel (0) target = $region5
  $region4: #{transformer_forward.11} parent=0 // pred_region
    _
  $region5: #{transformer_forward.11} parent=0 // pred_fallthru
    _
  // Predicated region
  $region6: #{transformer_forward.11} parent=0 // pred_check
    _
  $region7: #{transformer_forward.11} parent=0 // pred_check_branch
    %15 = sbr.rel (0) target = $region9
  $region8: #{transformer_forward.11} parent=0 // pred_region
    _
  $region9: #{transformer_forward.11} parent=0 // pred_fallthru
    _
  // Predicated region
  $region10: #{transformer_forward.11} parent=0 // pred_check
    _
  $region11: #{transformer_forward.11} parent=0 // pred_check_branch
    %17 = sbr.rel (0) target = $region13
  $region12: #{transformer_forward.11} parent=0 // pred_region
    _
  $region13: #{transformer_forward.11} parent=0 // pred_fallthru
    _
  // Predicated region
  $region14: #{transformer_forward.11} parent=0 // pred_check
    _
  $region15: #{transformer_forward.11} parent=0 // pred_check_branch
    %19 = sbr.rel (0) target = $region17
  $region16: #{transformer_forward.11} parent=0 // pred_region
    _
  $region17: #{transformer_forward.11} parent=0 // pred_fallthru
    _
  // Predicated region
  $region18: #{transformer_forward.11} parent=0 // pred_check
    _
  $region19: #{transformer_forward.11} parent=0 // pred_check_branch
    %21 = sbr.rel (0) target = $region21
  $region20: #{transformer_forward.11} parent=0 // pred_region
    _
  $region21: #{transformer_forward.11} parent=0 // pred_fallthru
    _
  // Predicated region
  $region22: #{transformer_forward.11} parent=0 // pred_check
    _
  $region23: #{transformer_forward.11} parent=0 // pred_check_branch
    %23 = sbr.rel (0) target = $region25
  $region24: #{transformer_forward.11} parent=0 // pred_region
    _
  $region25: #{transformer_forward.11} parent=0 // pred_fallthru
    _
  // Predicated region
  $region26: #{transformer_forward.11} parent=0 // pred_check
    _
  $region27: #{transformer_forward.11} parent=0 // pred_check_branch
    %25 = sbr.rel (0) target = $region29
  $region28: #{transformer_forward.11} parent=0 // pred_region
    _
  $region29: #{transformer_forward.11} parent=0 // pred_fallthru
    _
  %v27 = vld [vmem:[%s0] sm:$0xff]
  %v28 = vld [vmem:[%s0 + $0x8] sm:$0xff]
  %v29 = vld [vmem:[%s0 + $0x10] sm:$0xff]
  %v30 = vld [vmem:[%s0 + $0x18] sm:$0xff]
  %v31 = vpack.c.bf16 %v28, %v27
  %v32 = vpack.c.bf16 %v30, %v29
  %v33 = vld [vmem:[%s1] sm:$0xf]
  %v34 = vld [vmem:[%s1 + $0x4] sm:$0xf]
  %v35 = vld [vmem:[%s1 + $0x8] sm:$0xf]
  %v36 = vld [vmem:[%s1 + $0xc] sm:$0xf]
  %v37 = vld [vmem:[%s2] sm:$0x1]
  %v39 = vperm.slane %v37, 0
  %v45 = vunpack.c.l.b16 %v33
  %v46 = vunpack.c.l.b16 %v34
  %v47 = vunpack.c.l.b16 %v35
  %v48 = vunpack.c.l.b16 %v36
  %v49 = vpack.c.b16 %v46, %v45
  %v50 = vpack.c.b16 %v48, %v47
  %vm53 = vcmask 261120
  %v55 = vsel %vm53, %v31, 0
  %v58 = vsel %vm53, %v32, 0
  %60 = vmatpush.bf16.msra.mxu0 0
  %61 = vmatpush.bf16.msra.mxu0 0
  %62 = vmatpush.bf16.msra.mxu0 0
  %63 = vmatpush.bf16.msra.mxu0 0
  %64 = vmatpush.bf16.msra.mxu0 0
  %65 = vmatpush.bf16.msra.mxu0 0
  %66 = vmatpush.bf16.msra.mxu0 %v50
  %67 = vmatpush.bf16.msra.mxu0 %v49
  %68 = vmatmul.bf16.gmra.mxu0 %v55
  %v69 = vpop.f32.mrf.mxu0
  %v70 = vadd.f32 %v39, %v69
  %v71 = vpop.f32.mrf.mxu0
  %v72 = vadd.f32 %v39, %v71
  %73 = vmatmul.bf16.gmra.mxu0 %v58
  %v74 = vpop.f32.mrf.mxu0
  %v75 = vadd.f32 %v39, %v74
  %v76 = vpop.f32.mrf.mxu0
  %v77 = vadd.f32 %v39, %v76
  %78 = vdwg.mxu0
  %v79 = vmax.f32 %v70, 0.0
  %v80 = vmax.f32 %v72, 0.0
  %v81 = vmax.f32 %v75, 0.0
  %v82 = vmax.f32 %v77, 0.0
  %v83 = vpack.c.bf16 %v80, %v79
  %v84 = vpack.c.bf16 %v82, %v81
  %v85 = vld [vmem:[%s3] sm:$0xf]
  %v86 = vld [vmem:[%s3 + $0x4] sm:$0xf]
  %v87 = vld [vmem:[%s3 + $0x8] sm:$0xf]
  %v88 = vld [vmem:[%s3 + $0xc] sm:$0xf]
  %v89 = vld [vmem:[%s3 + $0x10] sm:$0xf]
  %v90 = vld [vmem:[%s3 + $0x14] sm:$0xf]
  %v91 = vld [vmem:[%s3 + $0x18] sm:$0xf]
  %v92 = vld [vmem:[%s3 + $0x1c] sm:$0xf]
  %v93 = vld [vmem:[%s3 + $0x20] sm:$0xf]
  %v94 = vld [vmem:[%s3 + $0x24] sm:$0xf]
  %v95 = vld [vmem:[%s3 + $0x28] sm:$0xf]
  %v96 = vld [vmem:[%s3 + $0x2c] sm:$0xf]
  %v97 = vld [vmem:[%s3 + $0x30] sm:$0xf]
  %v98 = vld [vmem:[%s3 + $0x34] sm:$0xf]
  %v99 = vld [vmem:[%s3 + $0x38] sm:$0xf]
  %v100 = vld [vmem:[%s3 + $0x3c] sm:$0xf]
  %v101 = vld [vmem:[%s4] sm:$0x1]
  %v103 = vperm.slane %v101, 0
  %v121 = vunpack.c.l.b16 %v85
  %v122 = vunpack.c.l.b16 %v86
  %v123 = vunpack.c.l.b16 %v87
  %v124 = vunpack.c.l.b16 %v88
  %v125 = vunpack.c.l.b16 %v89
  %v126 = vunpack.c.l.b16 %v90
  %v127 = vunpack.c.l.b16 %v91
  %v128 = vunpack.c.l.b16 %v92
  %v129 = vunpack.c.l.b16 %v93
  %v130 = vunpack.c.l.b16 %v94
  %v131 = vunpack.c.l.b16 %v95
  %v132 = vunpack.c.l.b16 %v96
  %v133 = vunpack.c.l.b16 %v97
  %v134 = vunpack.c.l.b16 %v98
  %v135 = vunpack.c.l.b16 %v99
  %v136 = vunpack.c.l.b16 %v100
  %v137 = vpack.c.b16 %v122, %v121
  %v138 = vpack.c.b16 %v124, %v123
  %v139 = vpack.c.b16 %v126, %v125
  %v140 = vpack.c.b16 %v128, %v127
  %v141 = vpack.c.b16 %v130, %v129
  %v142 = vpack.c.b16 %v132, %v131
  %v143 = vpack.c.b16 %v134, %v133
  %v144 = vpack.c.b16 %v136, %v135
  %153 = vmatpush.bf16.msra.mxu0 %v144
  %154 = vmatpush.bf16.msra.mxu0 %v143
  %155 = vmatpush.bf16.msra.mxu0 %v142
  %156 = vmatpush.bf16.msra.mxu0 %v141
  %157 = vmatpush.bf16.msra.mxu0 %v140
  %158 = vmatpush.bf16.msra.mxu0 %v139
  %159 = vmatpush.bf16.msra.mxu0 %v138
  %160 = vmatpush.bf16.msra.mxu0 %v137
  %161 = vmatmul.bf16.gmra.mxu0 %v83
  %v162 = vpop.f32.mrf.mxu0
  %v163 = vadd.f32 %v103, %v162
  %v164 = vpop.f32.mrf.mxu0
  %v165 = vadd.f32 %v103, %v164
  %166 = vmatmul.bf16.gmra.mxu0 %v84
  %v167 = vpop.f32.mrf.mxu0
  %v168 = vadd.f32 %v103, %v167
  %v169 = vpop.f32.mrf.mxu0
  %v170 = vadd.f32 %v103, %v169
  %171 = vdwg.mxu0
  %v172 = vadd.f32 %v163, %v27
  %v173 = vadd.f32 %v165, %v28
  %v174 = vadd.f32 %v168, %v29
  %v175 = vadd.f32 %v170, %v30
  %v176 = vld [vmem:[%s5] sm:$0x1]
  %v177 = vld [vmem:[%s6] sm:$0x1]
  %v178 = vsel %vm53, %v172, 0.0
  %179 = vadd.xlane.f32.xlu0 %v178
  %v180 = vpop.xlane.xlu0 %179
  %v181 = vsel %vm53, %v173, 0.0
  %182 = vadd.xlane.f32.xlu0 %v181
  %v183 = vpop.xlane.xlu0 %182
  %v184 = vsel %vm53, %v174, 0.0
  %185 = vadd.xlane.f32.xlu0 %v184
  %v186 = vpop.xlane.xlu0 %185
  %v187 = vsel %vm53, %v175, 0.0
  %188 = vadd.xlane.f32.xlu0 %v187
  %v189 = vpop.xlane.xlu0 %188
  %v190 = vrcp.pop 32.0
  %v191 = vmul.f32 32.0, %v190
  %v192 = vsub.f32 1.0, %v191
  %v193 = vmul.f32 %v190, %v192
  %v194 = vadd.f32 %v190, %v193
  %vm195 = vweird.f32 %v190
  %v196 = vsel %vm195, %v190, %v194
  %v197 = vmul.f32 %v180, %v196
  %v198 = vmul.f32 %v183, %v196
  %v199 = vmul.f32 %v186, %v196
  %v200 = vmul.f32 %v189, %v196
  %v201 = vsub.f32 %v172, %v197
  %v202 = vsub.f32 %v173, %v198
  %v203 = vsub.f32 %v174, %v199
  %v204 = vsub.f32 %v175, %v200
  %v205 = vmul.f32 %v201, %v201
  %v206 = vmul.f32 %v202, %v202
  %v207 = vmul.f32 %v203, %v203
  %v208 = vmul.f32 %v204, %v204
  %v209 = vsel %vm53, %v205, 0.0
  %210 = vadd.xlane.f32.xlu0 %v209
  %v211 = vpop.xlane.xlu0 %210
  %v212 = vsel %vm53, %v206, 0.0
  %213 = vadd.xlane.f32.xlu0 %v212
  %v214 = vpop.xlane.xlu0 %213
  %v215 = vsel %vm53, %v207, 0.0
  %216 = vadd.xlane.f32.xlu0 %v215
  %v217 = vpop.xlane.xlu0 %216
  %v218 = vsel %vm53, %v208, 0.0
  %219 = vadd.xlane.f32.xlu0 %v218
  %v220 = vpop.xlane.xlu0 %219
  %v221 = vmul.f32 %v211, %v196
  %v222 = vmul.f32 %v214, %v196
  %v223 = vmul.f32 %v217, %v196
  %v224 = vmul.f32 %v220, %v196
  %v225 = vadd.f32 %v221, 1e-05
  %v226 = vadd.f32 %v222, 1e-05
  %v227 = vadd.f32 %v223, 1e-05
  %v228 = vadd.f32 %v224, 1e-05
  %v229 = vrsqrt.pop %v225
  %v230 = vmul.f32 %v229, %v225
  %v231 = vmul.f32 %v230, %v229
  %v232 = vmul.f32 0.5, %v231
  %v233 = vsub.f32 1.5, %v232
  %v234 = vmul.f32 %v229, %v233
  %vm235 = vweird.f32 %v225
  %vm236 = vweird.f32 %v229
  %vm237 = vmor %vm235, %vm236
  %v238 = vsel %vm237, %v229, %v234
  %v239 = vrsqrt.pop %v226
  %v240 = vmul.f32 %v239, %v226
  %v241 = vmul.f32 %v240, %v239
  %v242 = vmul.f32 0.5, %v241
  %v243 = vsub.f32 1.5, %v242
  %v244 = vmul.f32 %v239, %v243
  %vm245 = vweird.f32 %v226
  %vm246 = vweird.f32 %v239
  %vm247 = vmor %vm245, %vm246
  %v248 = vsel %vm247, %v239, %v244
  %v249 = vrsqrt.pop %v227
  %v250 = vmul.f32 %v249, %v227
  %v251 = vmul.f32 %v250, %v249
  %v252 = vmul.f32 0.5, %v251
  %v253 = vsub.f32 1.5, %v252
  %v254 = vmul.f32 %v249, %v253
  %vm255 = vweird.f32 %v227
  %vm256 = vweird.f32 %v249
  %vm257 = vmor %vm255, %vm256
  %v258 = vsel %vm257, %v249, %v254
  %v259 = vrsqrt.pop %v228
  %v260 = vmul.f32 %v259, %v228
  %v261 = vmul.f32 %v260, %v259
  %v262 = vmul.f32 0.5, %v261
  %v263 = vsub.f32 1.5, %v262
  %v264 = vmul.f32 %v259, %v263
  %vm265 = vweird.f32 %v228
  %vm266 = vweird.f32 %v259
  %vm267 = vmor %vm265, %vm266
  %v268 = vsel %vm267, %v259, %v264
  %v269 = vmul.f32 %v201, %v238
  %v270 = vmul.f32 %v202, %v248
  %v271 = vmul.f32 %v203, %v258
  %v272 = vmul.f32 %v204, %v268
  %v274 = vperm.slane %v176, 0
  %v276 = vmul.f32 %v269, %v274
  %v277 = vmul.f32 %v270, %v274
  %v278 = vmul.f32 %v271, %v274
  %v279 = vmul.f32 %v272, %v274
  %v281 = vperm.slane %v177, 0
  %v283 = vadd.f32 %v276, %v281
  %v284 = vadd.f32 %v277, %v281
  %v285 = vadd.f32 %v278, %v281
  %v286 = vadd.f32 %v279, %v281
  %287 = vst.msk [vmem:[%s7] sm:$0xff] %vm53, %v283
  %288 = vst.msk [vmem:[%s7 + $0x8] sm:$0xff] %vm53, %v284
  %289 = vst.msk [vmem:[%s7 + $0x10] sm:$0xff] %vm53, %v285
  %290 = vst.msk [vmem:[%s7 + $0x18] sm:$0xff] %vm53, %v286
  // Predicated region
  $region30: #{transformer_forward.11} parent=0 // pred_check
    _
  $region31: #{transformer_forward.11} parent=0 // pred_check_branch
    %292 = sbr.rel (0) target = $region33
  $region32: #{transformer_forward.11} parent=0 // pred_region
    _
  $region33: #{transformer_forward.11} parent=0 // pred_fallthru
    _
  // Predicated region
  $region34: #{transformer_forward.11} parent=0 // pred_check
    _
  $region35: #{transformer_forward.11} parent=0 // pred_check_branch
    %294 = sbr.rel (0) target = $region37
  $region36: #{transformer_forward.11} parent=0 // pred_region
    _
  $region37: #{transformer_forward.11} parent=0 // pred_fallthru
    _

// kernel: transformer_forward.15
$region0: #{transformer_forward.15}
  #allocation0 [shape = 'u32[]', space=smem, size = 0x4, offset = 0x4, fixed_abs, tag = 'smem constant byte address 0x4 - core index']
  #allocation1 [shape = 'u32[72,128]{1,0:T(1,128)}', space=vmem, size = 0x9000, scoped, tag = 'internal scratch']
  %s0 = inlined_call_operand.vmem [shape: f32[2,32], index: 0, kind: input, shape index: {}]
  %s1 = inlined_call_operand.vmem [shape: bf16[32,8], index: 1, kind: input, shape index: {}]
  %s2 = inlined_call_operand.vmem [shape: f32[1,8], index: 2, kind: input, shape index: {}]
  %s3 = inlined_call_operand.hbm [shape: f32[2,8], index: 3, kind: output, shape index: {}]
  %s4 = sld [smem:[#allocation0]]
  $region22: #{transformer_forward.15} parent=0
    _
  %s6 = ssub.s32 1, %s4
  %s7 = scalar_select 0, %s6, %s4
  $region1: #{transformer_forward.15} parent=0
    #allocation2 [shape = 'u8[1024]{0}', space=vmem, size = 0x400, scoped, tag = 'output window, operand 0, single buffered']
    #allocation3 [shape = 's32[1]{0}', space=sflag, size = 0x4, scoped, tag = 'scoped memory for transformer_forward.15']
    %8 = vsyncpa [#allocation3], 0
    // Predicated region
    $region2: #{transformer_forward.15} parent=1 // pred_check
      _
    $region3: #{transformer_forward.15} parent=1 // pred_check_branch
      %10 = sbr.rel (0) target = $region5
    $region4: #{transformer_forward.15} parent=1 // pred_region
      _
    $region5: #{transformer_forward.15} parent=1 // pred_fallthru
      _
    // Predicated region
    $region6: #{transformer_forward.15} parent=1 // pred_check
      _
    $region7: #{transformer_forward.15} parent=1 // pred_check_branch
      %12 = sbr.rel (0) target = $region9
    $region8: #{transformer_forward.15} parent=1 // pred_region
      _
    $region9: #{transformer_forward.15} parent=1 // pred_fallthru
      _
    // Predicated region
    $region10: #{transformer_forward.15} parent=1 // pred_check
      _
    $region11: #{transformer_forward.15} parent=1 // pred_check_branch
      %14 = sbr.rel (0) target = $region13
    $region12: #{transformer_forward.15} parent=1 // pred_region
      _
    $region13: #{transformer_forward.15} parent=1 // pred_fallthru
      _
    %v16 = vld [vmem:[%s0] sm:$0x3]
    %v17 = vpack.c.bf16 %v16, %v16
    %v18 = vld [vmem:[%s1] sm:$0xf]
    %v19 = vld [vmem:[%s1 + $0x4] sm:$0xf]
    %v20 = vld [vmem:[%s1 + $0x8] sm:$0xf]
    %v21 = vld [vmem:[%s1 + $0xc] sm:$0xf]
    %v22 = vld [vmem:[%s2] sm:$0x1]
    %v24 = vperm.slane %v22, 0
    %v30 = vunpack.c.l.b16 %v18
    %v31 = vunpack.c.l.b16 %v19
    %v32 = vunpack.c.l.b16 %v20
    %v33 = vunpack.c.l.b16 %v21
    %v34 = vpack.c.b16 %v31, %v30
    %v35 = vpack.c.b16 %v33, %v32
    %vm38 = vcmask 261120
    %v40 = vsel %vm38, %v17, 0
    %42 = vmatpush.bf16.msra.mxu0 0
    %43 = vmatpush.bf16.msra.mxu0 0
    %44 = vmatpush.bf16.msra.mxu0 0
    %45 = vmatpush.bf16.msra.mxu0 0
    %46 = vmatpush.bf16.msra.mxu0 0
    %47 = vmatpush.bf16.msra.mxu0 0
    %48 = vmatpush.bf16.msra.mxu0 %v35
    %49 = vmatpush.bf16.msra.mxu0 %v34
    %50 = vmatmul.bf16.gmra.mxu0 %v40
    %v51 = vpop.f32.mrf.mxu0
    %v52 = vadd.f32 %v24, %v51
    %v53 = vpop.f32.mrf.mxu0
    %54 = vdwg.mxu0
    %vm55 = vcmask 58368
    %56 = vst.msk [vmem:[#allocation2] sm:$0x3] %vm55, %v52
    // Predicated region
    $region14: #{transformer_forward.15} parent=1 // pred_check
      _
    $region15: #{transformer_forward.15} parent=1 // pred_check_branch
      %58 = sbr.rel (0) target = $region17
    $region16: #{transformer_forward.15} parent=1 // pred_region
      %60 = vsyncadd [#allocation3], 0
      %s62 = sshll.u32 [#allocation2], 4
      %s63 = int_to_ptr.vmem [resolvable:$true] %s62
      %s64 = sshll.u32 %s3, 4
      %s65 = int_to_ptr.hbm [resolvable:$true] %s64
      %67 = dma.vmem_to_hbm [thread:$0]  %s63, 32, %s65, [#allocation3]
    $region17: #{transformer_forward.15} parent=1 // pred_fallthru
      _
    // Predicated region
    $region18: #{transformer_forward.15} parent=1 // pred_check
      _
    $region19: #{transformer_forward.15} parent=1 // pred_check_branch
      %69 = sbr.rel (0) target = $region21
    $region20: #{transformer_forward.15} parent=1 // pred_region
      %71 = dma.done [#allocation3], 32
    $region21: #{transformer_forward.15} parent=1 // pred_fallthru
      _
    %72 = vsyncpa [#allocation3], 1

</llo_original>
